<compile_context>
chip_gen: v7x
topology: tpu7x:2x2x1
jax: 0.10.0
libtpu: 0.0.40
codegen_flags: <defaults>
</compile_context>

<pallas_src>
import functools

import jax
import jax.numpy as jnp
from jax.experimental import pallas as pl
from jax.experimental.pallas import tpu as pltpu

# ---- model hyper-parameters (small, consistent with the module's __init__) ----
NUM_HEADS = 4
DIM_ELEMENTS = 32            # dim_keys_queries = dim_values = dim_elements
DIM_OUT = 32                 # attention_layer_dim_out
D_QK = DIM_OUT // NUM_HEADS  # per-head key/query dim
D_V = DIM_OUT // NUM_HEADS   # per-head value dim
SET_SIZE = 8
BATCH = 2
LN_EPS = 1e-5


def _layer_norm(z, gamma, beta):
    mu = jnp.mean(z, axis=-1, keepdims=True)
    var = jnp.mean((z - mu) ** 2, axis=-1, keepdims=True)
    return (z - mu) * jax.lax.rsqrt(var + LN_EPS) * gamma + beta


def sab_kernel(x_ref, wqkv_ref, wo_ref, wff_ref, vecs_ref, o_ref, *,
               num_heads, d_qk, d_v):
    """One grid step == one set.  x_ref: (N, D), o_ref: (N, DIM_OUT)."""
    x = x_ref[...].astype(jnp.float32)                 # (N, D)
    vecs = vecs_ref[...].astype(jnp.float32)           # (6, D): g1,b1,g2,b2,bo,bff
    g1, b1 = vecs[0:1, :], vecs[1:2, :]
    g2, b2 = vecs[2:3, :], vecs[3:4, :]
    bo, bff = vecs[4:5, :], vecs[5:6, :]

    # --- pre-LN on the input tokens (f32 elementwise; v5e has no bf16 VPU/EUP path) ---
    xn = _layer_norm(x, g1, b1)

    # --- fused Q/K/V projection: one MXU matmul (scale pre-folded into the Q columns) ---
    qkv = jnp.dot(xn, wqkv_ref[...], preferred_element_type=jnp.float32)  # (N, 3*H*d)

    k_off = num_heads * d_qk
    v_off = 2 * num_heads * d_qk
    n = x.shape[0]

    # Per-head attention within the set; head outputs folded directly into the Wo matmul
    # via sublane slices of Wo (no lane-axis concatenate).
    # NOTE: the per-head (N, d) slices only use 8 lanes of a 128-lane vreg; acceptable at
    # this size, revisit with a head-major / lane-packed layout if N or d grow.
    attn = jnp.zeros((n, o_ref.shape[-1]), jnp.float32)
    for h in range(num_heads):
        qh = qkv[:, h * d_qk:(h + 1) * d_qk]                       # (N, d_qk), pre-scaled
        kh = qkv[:, k_off + h * d_qk: k_off + (h + 1) * d_qk]      # (N, d_qk)
        vh = qkv[:, v_off + h * d_v: v_off + (h + 1) * d_v]        # (N, d_v)

        # Contract dim 1 of both operands -> no explicit kh.T (no XLU transpose).
        s = jax.lax.dot_general(qh, kh, (((1,), (1,)), ((), ())),
                                preferred_element_type=jnp.float32)  # (N, N)
        s = s - jnp.max(s, axis=-1, keepdims=True)
        p = jnp.exp(s)
        inv = pl.reciprocal(jnp.sum(p, axis=-1, keepdims=True), approx=True)  # EUP slot
        pv = jnp.dot(p, vh, preferred_element_type=jnp.float32) * inv         # (N, d_v)
        attn = attn + jnp.dot(pv, wo_ref[h * d_v:(h + 1) * d_v, :],
                              preferred_element_type=jnp.float32)

    # --- output projection bias + residual tokens ---
    h1 = x + attn + bo

    # --- rFF with pre-LN residual ---
    hn = _layer_norm(h1, g2, b2)
    ff = jnp.dot(hn, wff_ref[...], preferred_element_type=jnp.float32) + bff
    o_ref[...] = (h1 + jnp.maximum(ff, 0.0)).astype(o_ref.dtype)


def sab_block(xs, packed_params):
    """xs: (B, N, D_in) -> (B, N, DIM_OUT).  Grid over the batch (set) axis."""
    B, N, D = xs.shape
    assert D == DIM_ELEMENTS
    # add_residual_tokens requires matching dims for the xs + attn residual.
    assert DIM_ELEMENTS == DIM_OUT
    wqkv, wo, wff, vecs = packed_params

    kernel = functools.partial(sab_kernel, num_heads=NUM_HEADS, d_qk=D_QK, d_v=D_V)

    # Weights: constant block index every grid step -> single DMA, stays VMEM-resident.
    const2d = lambda b: (0, 0)

    return pl.pallas_call(
        kernel,
        out_shape=jax.ShapeDtypeStruct((B, N, DIM_OUT), xs.dtype),
        grid_spec=pltpu.PrefetchScalarGridSpec(
            num_scalar_prefetch=0,
            grid=(B,),
            in_specs=[
                pl.BlockSpec((None, N, D), lambda b: (b, 0, 0)),     # one set per step
                pl.BlockSpec(wqkv.shape, const2d),
                pl.BlockSpec(wo.shape, const2d),
                pl.BlockSpec(wff.shape, const2d),
                pl.BlockSpec(vecs.shape, const2d),
            ],
            out_specs=pl.BlockSpec((None, N, DIM_OUT), lambda b: (b, 0, 0)),
        ),
        compiler_params=pltpu.CompilerParams(
            dimension_semantics=("parallel",)),   # sets are independent (v7x: split 2 TCs)
    )(xs, wqkv, wo, wff, vecs)


def init_params(key):
    """Raw (unfused) parameters, matching the PyTorch module's layout."""
    ks = jax.random.split(key, 6)
    scale_in = 1.0 / (DIM_ELEMENTS ** 0.5)
    scale_out = 1.0 / (DIM_OUT ** 0.5)
    wq = jax.random.normal(ks[0], (DIM_ELEMENTS, NUM_HEADS * D_QK), jnp.float32) * scale_in
    wk = jax.random.normal(ks[1], (DIM_ELEMENTS, NUM_HEADS * D_QK), jnp.float32) * scale_in
    wv = jax.random.normal(ks[2], (DIM_ELEMENTS, NUM_HEADS * D_V), jnp.float32) * scale_in
    wo = jax.random.normal(ks[3], (NUM_HEADS * D_V, DIM_OUT), jnp.float32) * scale_out
    bo = jnp.zeros((1, DIM_OUT), jnp.float32)
    wff = jax.random.normal(ks[4], (DIM_OUT, DIM_OUT), jnp.float32) * scale_out
    bff = jnp.zeros((1, DIM_OUT), jnp.float32)
    g1 = jnp.ones((1, DIM_ELEMENTS), jnp.float32)
    b1 = jnp.zeros((1, DIM_ELEMENTS), jnp.float32)
    g2 = jnp.ones((1, DIM_OUT), jnp.float32)
    b2 = jnp.zeros((1, DIM_OUT), jnp.float32)
    return (wq, wk, wv, wo, bo, wff, bff, g1, b1, g2, b2)


def pack_params(raw):
    """One-time (init-time) fusion: fused QKV weight with folded scale, packed vectors."""
    wq, wk, wv, wo, bo, wff, bff, g1, b1, g2, b2 = raw
    inv_scale = 1.0 / (D_QK ** 0.5)
    wqkv = jnp.concatenate([wq * inv_scale, wk, wv], axis=1)        # (D, 3*H*d)
    vecs = jnp.concatenate([g1, b1, g2, b2, bo, bff], axis=0)       # (6, D)
    return wqkv, wo, wff, vecs


def sab_reference(xs, raw):
    """Pure-JAX reference of the same forward pass (unfused params, exact softmax)."""
    wq, wk, wv, wo, bo, wff, bff, g1, b1, g2, b2 = raw
    B, N, _ = xs.shape

    def ln(z, g, b):
        mu = z.mean(-1, keepdims=True)
        var = ((z - mu) ** 2).mean(-1, keepdims=True)
        return (z - mu) * jax.lax.rsqrt(var + LN_EPS) * g + b

    xn = ln(xs, g1, b1)
    q = xn @ wq
    k = xn @ wk
    v = xn @ wv
    qh = q.reshape(B, N, NUM_HEADS, D_QK).transpose(0, 2, 1, 3)
    kh = k.reshape(B, N, NUM_HEADS, D_QK).transpose(0, 2, 1, 3)
    vh = v.reshape(B, N, NUM_HEADS, D_V).transpose(0, 2, 1, 3)
    s = jnp.einsum("bhnd,bhmd->bhnm", qh, kh) / (D_QK ** 0.5)
    p = jax.nn.softmax(s, axis=-1)
    o = jnp.einsum("bhnm,bhmd->bhnd", p, vh)
    o = o.transpose(0, 2, 1, 3).reshape(B, N, NUM_HEADS * D_V)
    attn = o @ wo + bo
    h1 = xs + attn
    hn = ln(h1, g2, b2)
    return h1 + jax.nn.relu(hn @ wff + bff)


if __name__ == "__main__":
    key = jax.random.PRNGKey(0)
    kx, kp = jax.random.split(key)
    xs = jax.random.normal(kx, (BATCH, SET_SIZE, DIM_ELEMENTS), jnp.float32)
    raw = init_params(kp)
    packed = pack_params(raw)

    out = sab_block(xs, packed)
    out = jax.block_until_ready(out)
    assert out.shape == (BATCH, SET_SIZE, DIM_OUT)
    assert bool(jnp.all(jnp.isfinite(out)))

    ref = sab_reference(xs, raw)
    max_err = float(jnp.max(jnp.abs(out - ref)))
    assert max_err < 1e-2, f"mismatch vs reference: {max_err}"

    print("KERNEL_OK")
</pallas_src>

<mosaic_0001>
module attributes {stable_mosaic.version = 11 : i64} {
  func.func @sab_kernel(%arg0: i32, %arg1: memref<1x8x32xf32, #tpu.memory_space<vmem>>, %arg2: memref<32x96xf32, #tpu.memory_space<vmem>>, %arg3: memref<32x32xf32, #tpu.memory_space<vmem>>, %arg4: memref<32x32xf32, #tpu.memory_space<vmem>>, %arg5: memref<6x32xf32, #tpu.memory_space<vmem>>, %arg6: memref<1x8x32xf32, #tpu.memory_space<vmem>>) attributes {dimension_semantics = [#tpu.dimension_semantics<parallel>], iteration_bounds = array<i64: 2>, scalar_prefetch = 0 : i64, scratch_operands = 0 : i64, tpu.core_type = #tpu.core_type<tc>, window_params = [{transform_indices = @transform_0, window_bounds = array<i64: 1, 8, 32>}, {pipeline_mode = #tpu.pipeline_mode<synchronous>, transform_indices = @transform_1, window_bounds = array<i64: 32, 96>}, {pipeline_mode = #tpu.pipeline_mode<synchronous>, transform_indices = @transform_2, window_bounds = array<i64: 32, 32>}, {pipeline_mode = #tpu.pipeline_mode<synchronous>, transform_indices = @transform_3, window_bounds = array<i64: 32, 32>}, {pipeline_mode = #tpu.pipeline_mode<synchronous>, transform_indices = @transform_4, window_bounds = array<i64: 6, 32>}, {transform_indices = @transform_5, window_bounds = array<i64: 1, 8, 32>}]} {
    %c0 = arith.constant 0 : index
    %c0_0 = arith.constant 0 : index
    %c0_1 = arith.constant 0 : index
    %0 = vector.load %arg1[%c0, %c0_0, %c0_1] : memref<1x8x32xf32, #tpu.memory_space<vmem>>, vector<1x8x32xf32>
    %1 = vector.shape_cast %0 : vector<1x8x32xf32> to vector<8x32xf32>
    %c0_2 = arith.constant 0 : index
    %c0_3 = arith.constant 0 : index
    %2 = vector.load %arg5[%c0_2, %c0_3] : memref<6x32xf32, #tpu.memory_space<vmem>>, vector<6x32xf32>
    %3 = vector.extract_strided_slice %2 {offsets = [0, 0], sizes = [1, 32], strides = [1, 1]} : vector<6x32xf32> to vector<1x32xf32>
    %4 = vector.extract_strided_slice %2 {offsets = [1, 0], sizes = [1, 32], strides = [1, 1]} : vector<6x32xf32> to vector<1x32xf32>
    %5 = vector.extract_strided_slice %2 {offsets = [2, 0], sizes = [1, 32], strides = [1, 1]} : vector<6x32xf32> to vector<1x32xf32>
    %6 = vector.extract_strided_slice %2 {offsets = [3, 0], sizes = [1, 32], strides = [1, 1]} : vector<6x32xf32> to vector<1x32xf32>
    %7 = vector.extract_strided_slice %2 {offsets = [4, 0], sizes = [1, 32], strides = [1, 1]} : vector<6x32xf32> to vector<1x32xf32>
    %8 = vector.extract_strided_slice %2 {offsets = [5, 0], sizes = [1, 32], strides = [1, 1]} : vector<6x32xf32> to vector<1x32xf32>
    %cst = arith.constant dense<0.000000e+00> : vector<8xf32>
    %9 = vector.multi_reduction <add>, %1, %cst [1] : vector<8x32xf32> to vector<8xf32>
    %10 = vector.shape_cast %9 : vector<8xf32> to vector<8x1xf32>
    %cst_4 = arith.constant 3.200000e+01 : f32
    %11 = vector.broadcast %cst_4 : f32 to vector<8x1xf32>
    %12 = arith.divf %10, %11 : vector<8x1xf32>
    %13 = vector.broadcast %12 : vector<8x1xf32> to vector<8x32xf32>
    %14 = arith.subf %1, %13 : vector<8x32xf32>
    %15 = arith.mulf %14, %14 : vector<8x32xf32>
    %cst_5 = arith.constant dense<0.000000e+00> : vector<8xf32>
    %16 = vector.multi_reduction <add>, %15, %cst_5 [1] : vector<8x32xf32> to vector<8xf32>
    %17 = vector.shape_cast %16 : vector<8xf32> to vector<8x1xf32>
    %cst_6 = arith.constant 3.200000e+01 : f32
    %18 = vector.broadcast %cst_6 : f32 to vector<8x1xf32>
    %19 = arith.divf %17, %18 : vector<8x1xf32>
    %20 = vector.broadcast %12 : vector<8x1xf32> to vector<8x32xf32>
    %21 = arith.subf %1, %20 : vector<8x32xf32>
    %cst_7 = arith.constant 9.99999974E-6 : f32
    %22 = vector.broadcast %cst_7 : f32 to vector<8x1xf32>
    %23 = arith.addf %19, %22 : vector<8x1xf32>
    %24 = math.rsqrt %23 : vector<8x1xf32>
    %25 = vector.broadcast %24 : vector<8x1xf32> to vector<8x32xf32>
    %26 = arith.mulf %21, %25 : vector<8x32xf32>
    %27 = vector.broadcast %3 : vector<1x32xf32> to vector<8x32xf32>
    %28 = arith.mulf %26, %27 : vector<8x32xf32>
    %29 = vector.broadcast %4 : vector<1x32xf32> to vector<8x32xf32>
    %30 = arith.addf %28, %29 : vector<8x32xf32>
    %c0_8 = arith.constant 0 : index
    %c0_9 = arith.constant 0 : index
    %31 = vector.load %arg2[%c0_8, %c0_9] : memref<32x96xf32, #tpu.memory_space<vmem>>, vector<32x96xf32>
    %cst_10 = arith.constant dense<0.000000e+00> : vector<8x96xf32>
    %32 = tpu.matmul %30, %31, %cst_10 {dimension_numbers = #tpu.dot_dimension_numbers<[1], [0], [0], [1], [0, 0, 1, 1], [], []>} : vector<8x32xf32>, vector<32x96xf32>, vector<8x96xf32> -> vector<8x96xf32>
    %cst_11 = arith.constant 0.000000e+00 : f32
    %33 = vector.broadcast %cst_11 : f32 to vector<8x32xf32>
    %34 = vector.extract_strided_slice %32 {offsets = [0, 0], sizes = [8, 8], strides = [1, 1]} : vector<8x96xf32> to vector<8x8xf32>
    %35 = vector.extract_strided_slice %32 {offsets = [0, 32], sizes = [8, 8], strides = [1, 1]} : vector<8x96xf32> to vector<8x8xf32>
    %36 = vector.extract_strided_slice %32 {offsets = [0, 64], sizes = [8, 8], strides = [1, 1]} : vector<8x96xf32> to vector<8x8xf32>
    %cst_12 = arith.constant dense<0.000000e+00> : vector<8x8xf32>
    %37 = tpu.matmul %34, %35, %cst_12 {dimension_numbers = #tpu.dot_dimension_numbers<[1], [1], [0], [0], [0, 0, 1, 0], [], []>} : vector<8x8xf32>, vector<8x8xf32>, vector<8x8xf32> -> vector<8x8xf32>
    %cst_13 = arith.constant dense<0xFF800000> : vector<8xf32>
    %38 = vector.multi_reduction <maximumf>, %37, %cst_13 [1] : vector<8x8xf32> to vector<8xf32>
    %39 = vector.shape_cast %38 : vector<8xf32> to vector<8x1xf32>
    %40 = vector.broadcast %39 : vector<8x1xf32> to vector<8x8xf32>
    %41 = arith.subf %37, %40 : vector<8x8xf32>
    %42 = math.exp %41 : vector<8x8xf32>
    %cst_14 = arith.constant dense<0.000000e+00> : vector<8xf32>
    %43 = vector.multi_reduction <add>, %42, %cst_14 [1] : vector<8x8xf32> to vector<8xf32>
    %44 = vector.shape_cast %43 : vector<8xf32> to vector<8x1xf32>
    %45 = tpu.reciprocal %44 {approx = true} : vector<8x1xf32> -> vector<8x1xf32>
    %cst_15 = arith.constant dense<0.000000e+00> : vector<8x8xf32>
    %46 = tpu.matmul %42, %36, %cst_15 {dimension_numbers = #tpu.dot_dimension_numbers<[1], [0], [0], [1], [0, 0, 1, 1], [], []>} : vector<8x8xf32>, vector<8x8xf32>, vector<8x8xf32> -> vector<8x8xf32>
    %47 = vector.broadcast %45 : vector<8x1xf32> to vector<8x8xf32>
    %48 = arith.mulf %46, %47 : vector<8x8xf32>
    %c0_16 = arith.constant 0 : index
    %c0_17 = arith.constant 0 : index
    %49 = vector.load %arg3[%c0_16, %c0_17] : memref<32x32xf32, #tpu.memory_space<vmem>>, vector<8x32xf32>
    %cst_18 = arith.constant dense<0.000000e+00> : vector<8x32xf32>
    %50 = tpu.matmul %48, %49, %cst_18 {dimension_numbers = #tpu.dot_dimension_numbers<[1], [0], [0], [1], [0, 0, 1, 1], [], []>} : vector<8x8xf32>, vector<8x32xf32>, vector<8x32xf32> -> vector<8x32xf32>
    %51 = arith.addf %33, %50 : vector<8x32xf32>
    %52 = vector.extract_strided_slice %32 {offsets = [0, 8], sizes = [8, 8], strides = [1, 1]} : vector<8x96xf32> to vector<8x8xf32>
    %53 = vector.extract_strided_slice %32 {offsets = [0, 40], sizes = [8, 8], strides = [1, 1]} : vector<8x96xf32> to vector<8x8xf32>
    %54 = vector.extract_strided_slice %32 {offsets = [0, 72], sizes = [8, 8], strides = [1, 1]} : vector<8x96xf32> to vector<8x8xf32>
    %cst_19 = arith.constant dense<0.000000e+00> : vector<8x8xf32>
    %55 = tpu.matmul %52, %53, %cst_19 {dimension_numbers = #tpu.dot_dimension_numbers<[1], [1], [0], [0], [0, 0, 1, 0], [], []>} : vector<8x8xf32>, vector<8x8xf32>, vector<8x8xf32> -> vector<8x8xf32>
    %cst_20 = arith.constant dense<0xFF800000> : vector<8xf32>
    %56 = vector.multi_reduction <maximumf>, %55, %cst_20 [1] : vector<8x8xf32> to vector<8xf32>
    %57 = vector.shape_cast %56 : vector<8xf32> to vector<8x1xf32>
    %58 = vector.broadcast %57 : vector<8x1xf32> to vector<8x8xf32>
    %59 = arith.subf %55, %58 : vector<8x8xf32>
    %60 = math.exp %59 : vector<8x8xf32>
    %cst_21 = arith.constant dense<0.000000e+00> : vector<8xf32>
    %61 = vector.multi_reduction <add>, %60, %cst_21 [1] : vector<8x8xf32> to vector<8xf32>
    %62 = vector.shape_cast %61 : vector<8xf32> to vector<8x1xf32>
    %63 = tpu.reciprocal %62 {approx = true} : vector<8x1xf32> -> vector<8x1xf32>
    %cst_22 = arith.constant dense<0.000000e+00> : vector<8x8xf32>
    %64 = tpu.matmul %60, %54, %cst_22 {dimension_numbers = #tpu.dot_dimension_numbers<[1], [0], [0], [1], [0, 0, 1, 1], [], []>} : vector<8x8xf32>, vector<8x8xf32>, vector<8x8xf32> -> vector<8x8xf32>
    %65 = vector.broadcast %63 : vector<8x1xf32> to vector<8x8xf32>
    %66 = arith.mulf %64, %65 : vector<8x8xf32>
    %c8 = arith.constant 8 : index
    %c0_23 = arith.constant 0 : index
    %67 = vector.load %arg3[%c8, %c0_23] : memref<32x32xf32, #tpu.memory_space<vmem>>, vector<8x32xf32>
    %cst_24 = arith.constant dense<0.000000e+00> : vector<8x32xf32>
    %68 = tpu.matmul %66, %67, %cst_24 {dimension_numbers = #tpu.dot_dimension_numbers<[1], [0], [0], [1], [0, 0, 1, 1], [], []>} : vector<8x8xf32>, vector<8x32xf32>, vector<8x32xf32> -> vector<8x32xf32>
    %69 = arith.addf %51, %68 : vector<8x32xf32>
    %70 = vector.extract_strided_slice %32 {offsets = [0, 16], sizes = [8, 8], strides = [1, 1]} : vector<8x96xf32> to vector<8x8xf32>
    %71 = vector.extract_strided_slice %32 {offsets = [0, 48], sizes = [8, 8], strides = [1, 1]} : vector<8x96xf32> to vector<8x8xf32>
    %72 = vector.extract_strided_slice %32 {offsets = [0, 80], sizes = [8, 8], strides = [1, 1]} : vector<8x96xf32> to vector<8x8xf32>
    %cst_25 = arith.constant dense<0.000000e+00> : vector<8x8xf32>
    %73 = tpu.matmul %70, %71, %cst_25 {dimension_numbers = #tpu.dot_dimension_numbers<[1], [1], [0], [0], [0, 0, 1, 0], [], []>} : vector<8x8xf32>, vector<8x8xf32>, vector<8x8xf32> -> vector<8x8xf32>
    %cst_26 = arith.constant dense<0xFF800000> : vector<8xf32>
    %74 = vector.multi_reduction <maximumf>, %73, %cst_26 [1] : vector<8x8xf32> to vector<8xf32>
    %75 = vector.shape_cast %74 : vector<8xf32> to vector<8x1xf32>
    %76 = vector.broadcast %75 : vector<8x1xf32> to vector<8x8xf32>
    %77 = arith.subf %73, %76 : vector<8x8xf32>
    %78 = math.exp %77 : vector<8x8xf32>
    %cst_27 = arith.constant dense<0.000000e+00> : vector<8xf32>
    %79 = vector.multi_reduction <add>, %78, %cst_27 [1] : vector<8x8xf32> to vector<8xf32>
    %80 = vector.shape_cast %79 : vector<8xf32> to vector<8x1xf32>
    %81 = tpu.reciprocal %80 {approx = true} : vector<8x1xf32> -> vector<8x1xf32>
    %cst_28 = arith.constant dense<0.000000e+00> : vector<8x8xf32>
    %82 = tpu.matmul %78, %72, %cst_28 {dimension_numbers = #tpu.dot_dimension_numbers<[1], [0], [0], [1], [0, 0, 1, 1], [], []>} : vector<8x8xf32>, vector<8x8xf32>, vector<8x8xf32> -> vector<8x8xf32>
    %83 = vector.broadcast %81 : vector<8x1xf32> to vector<8x8xf32>
    %84 = arith.mulf %82, %83 : vector<8x8xf32>
    %c16 = arith.constant 16 : index
    %c0_29 = arith.constant 0 : index
    %85 = vector.load %arg3[%c16, %c0_29] : memref<32x32xf32, #tpu.memory_space<vmem>>, vector<8x32xf32>
    %cst_30 = arith.constant dense<0.000000e+00> : vector<8x32xf32>
    %86 = tpu.matmul %84, %85, %cst_30 {dimension_numbers = #tpu.dot_dimension_numbers<[1], [0], [0], [1], [0, 0, 1, 1], [], []>} : vector<8x8xf32>, vector<8x32xf32>, vector<8x32xf32> -> vector<8x32xf32>
    %87 = arith.addf %69, %86 : vector<8x32xf32>
    %88 = vector.extract_strided_slice %32 {offsets = [0, 24], sizes = [8, 8], strides = [1, 1]} : vector<8x96xf32> to vector<8x8xf32>
    %89 = vector.extract_strided_slice %32 {offsets = [0, 56], sizes = [8, 8], strides = [1, 1]} : vector<8x96xf32> to vector<8x8xf32>
    %90 = vector.extract_strided_slice %32 {offsets = [0, 88], sizes = [8, 8], strides = [1, 1]} : vector<8x96xf32> to vector<8x8xf32>
    %cst_31 = arith.constant dense<0.000000e+00> : vector<8x8xf32>
    %91 = tpu.matmul %88, %89, %cst_31 {dimension_numbers = #tpu.dot_dimension_numbers<[1], [1], [0], [0], [0, 0, 1, 0], [], []>} : vector<8x8xf32>, vector<8x8xf32>, vector<8x8xf32> -> vector<8x8xf32>
    %cst_32 = arith.constant dense<0xFF800000> : vector<8xf32>
    %92 = vector.multi_reduction <maximumf>, %91, %cst_32 [1] : vector<8x8xf32> to vector<8xf32>
    %93 = vector.shape_cast %92 : vector<8xf32> to vector<8x1xf32>
    %94 = vector.broadcast %93 : vector<8x1xf32> to vector<8x8xf32>
    %95 = arith.subf %91, %94 : vector<8x8xf32>
    %96 = math.exp %95 : vector<8x8xf32>
    %cst_33 = arith.constant dense<0.000000e+00> : vector<8xf32>
    %97 = vector.multi_reduction <add>, %96, %cst_33 [1] : vector<8x8xf32> to vector<8xf32>
    %98 = vector.shape_cast %97 : vector<8xf32> to vector<8x1xf32>
    %99 = tpu.reciprocal %98 {approx = true} : vector<8x1xf32> -> vector<8x1xf32>
    %cst_34 = arith.constant dense<0.000000e+00> : vector<8x8xf32>
    %100 = tpu.matmul %96, %90, %cst_34 {dimension_numbers = #tpu.dot_dimension_numbers<[1], [0], [0], [1], [0, 0, 1, 1], [], []>} : vector<8x8xf32>, vector<8x8xf32>, vector<8x8xf32> -> vector<8x8xf32>
    %101 = vector.broadcast %99 : vector<8x1xf32> to vector<8x8xf32>
    %102 = arith.mulf %100, %101 : vector<8x8xf32>
    %c24 = arith.constant 24 : index
    %c0_35 = arith.constant 0 : index
    %103 = vector.load %arg3[%c24, %c0_35] : memref<32x32xf32, #tpu.memory_space<vmem>>, vector<8x32xf32>
    %cst_36 = arith.constant dense<0.000000e+00> : vector<8x32xf32>
    %104 = tpu.matmul %102, %103, %cst_36 {dimension_numbers = #tpu.dot_dimension_numbers<[1], [0], [0], [1], [0, 0, 1, 1], [], []>} : vector<8x8xf32>, vector<8x32xf32>, vector<8x32xf32> -> vector<8x32xf32>
    %105 = arith.addf %87, %104 : vector<8x32xf32>
    %106 = arith.addf %1, %105 : vector<8x32xf32>
    %107 = vector.broadcast %7 : vector<1x32xf32> to vector<8x32xf32>
    %108 = arith.addf %106, %107 : vector<8x32xf32>
    %cst_37 = arith.constant dense<0.000000e+00> : vector<8xf32>
    %109 = vector.multi_reduction <add>, %108, %cst_37 [1] : vector<8x32xf32> to vector<8xf32>
    %110 = vector.shape_cast %109 : vector<8xf32> to vector<8x1xf32>
    %cst_38 = arith.constant 3.200000e+01 : f32
    %111 = vector.broadcast %cst_38 : f32 to vector<8x1xf32>
    %112 = arith.divf %110, %111 : vector<8x1xf32>
    %113 = vector.broadcast %112 : vector<8x1xf32> to vector<8x32xf32>
    %114 = arith.subf %108, %113 : vector<8x32xf32>
    %115 = arith.mulf %114, %114 : vector<8x32xf32>
    %cst_39 = arith.constant dense<0.000000e+00> : vector<8xf32>
    %116 = vector.multi_reduction <add>, %115, %cst_39 [1] : vector<8x32xf32> to vector<8xf32>
    %117 = vector.shape_cast %116 : vector<8xf32> to vector<8x1xf32>
    %cst_40 = arith.constant 3.200000e+01 : f32
    %118 = vector.broadcast %cst_40 : f32 to vector<8x1xf32>
    %119 = arith.divf %117, %118 : vector<8x1xf32>
    %120 = vector.broadcast %112 : vector<8x1xf32> to vector<8x32xf32>
    %121 = arith.subf %108, %120 : vector<8x32xf32>
    %cst_41 = arith.constant 9.99999974E-6 : f32
    %122 = vector.broadcast %cst_41 : f32 to vector<8x1xf32>
    %123 = arith.addf %119, %122 : vector<8x1xf32>
    %124 = math.rsqrt %123 : vector<8x1xf32>
    %125 = vector.broadcast %124 : vector<8x1xf32> to vector<8x32xf32>
    %126 = arith.mulf %121, %125 : vector<8x32xf32>
    %127 = vector.broadcast %5 : vector<1x32xf32> to vector<8x32xf32>
    %128 = arith.mulf %126, %127 : vector<8x32xf32>
    %129 = vector.broadcast %6 : vector<1x32xf32> to vector<8x32xf32>
    %130 = arith.addf %128, %129 : vector<8x32xf32>
    %c0_42 = arith.constant 0 : index
    %c0_43 = arith.constant 0 : index
    %131 = vector.load %arg4[%c0_42, %c0_43] : memref<32x32xf32, #tpu.memory_space<vmem>>, vector<32x32xf32>
    %cst_44 = arith.constant dense<0.000000e+00> : vector<8x32xf32>
    %132 = tpu.matmul %130, %131, %cst_44 {dimension_numbers = #tpu.dot_dimension_numbers<[1], [0], [0], [1], [0, 0, 1, 1], [], []>} : vector<8x32xf32>, vector<32x32xf32>, vector<8x32xf32> -> vector<8x32xf32>
    %133 = vector.broadcast %8 : vector<1x32xf32> to vector<8x32xf32>
    %134 = arith.addf %132, %133 : vector<8x32xf32>
    %cst_45 = arith.constant 0.000000e+00 : f32
    %135 = vector.broadcast %cst_45 : f32 to vector<8x32xf32>
    %136 = arith.maximumf %134, %135 : vector<8x32xf32>
    %137 = arith.addf %108, %136 : vector<8x32xf32>
    %c0_46 = arith.constant 0 : index
    %c0_47 = arith.constant 0 : index
    %c0_48 = arith.constant 0 : index
    %138 = vector.load %arg6[%c0_46, %c0_47, %c0_48] : memref<1x8x32xf32, #tpu.memory_space<vmem>>, vector<1x8x32xf32>
    %139 = vector.shape_cast %138 : vector<1x8x32xf32> to vector<8x32xf32>
    %140 = vector.shape_cast %137 : vector<8x32xf32> to vector<1x8x32xf32>
    tpu.vector_store %arg6[%c0_46, %c0_47, %c0_48], %140 {strides = array<i32>} : memref<1x8x32xf32, #tpu.memory_space<vmem>>, vector<1x8x32xf32>,
    return
  }
  func.func @transform_0(%arg0: i32) -> (i32, i32, i32) {
    %c0_i32 = arith.constant 0 : i32
    %c0_i32_0 = arith.constant 0 : i32
    %c0_i32_1 = arith.constant 0 : i32
    return %arg0, %c0_i32, %c0_i32_0 : i32, i32, i32
  }
  func.func @transform_1(%arg0: i32) -> (i32, i32) {
    %c0_i32 = arith.constant 0 : i32
    %c0_i32_0 = arith.constant 0 : i32
    %c0_i32_1 = arith.constant 0 : i32
    return %c0_i32, %c0_i32_0 : i32, i32
  }
  func.func @transform_2(%arg0: i32) -> (i32, i32) {
    %c0_i32 = arith.constant 0 : i32
    %c0_i32_0 = arith.constant 0 : i32
    %c0_i32_1 = arith.constant 0 : i32
    return %c0_i32, %c0_i32_0 : i32, i32
  }
  func.func @transform_3(%arg0: i32) -> (i32, i32) {
    %c0_i32 = arith.constant 0 : i32
    %c0_i32_0 = arith.constant 0 : i32
    %c0_i32_1 = arith.constant 0 : i32
    return %c0_i32, %c0_i32_0 : i32, i32
  }
  func.func @transform_4(%arg0: i32) -> (i32, i32) {
    %c0_i32 = arith.constant 0 : i32
    %c0_i32_0 = arith.constant 0 : i32
    %c0_i32_1 = arith.constant 0 : i32
    return %c0_i32, %c0_i32_0 : i32, i32
  }
  func.func @transform_5(%arg0: i32) -> (i32, i32, i32) {
    %c0_i32 = arith.constant 0 : i32
    %c0_i32_0 = arith.constant 0 : i32
    %c0_i32_1 = arith.constant 0 : i32
    return %arg0, %c0_i32, %c0_i32_0 : i32, i32, i32
  }
}

</mosaic_0001>

<llo_original>
// kernel: tpu_custom_call.1
$region0: #{tpu_custom_call.1}
  #allocation0 [shape = 'u32[]', space=smem, size = 0x4, offset = 0x4, fixed_abs, tag = 'smem constant byte address 0x4 - core index']
  #allocation1 [shape = 'u32[144,128]{1,0:T(1,128)}', space=vmem, size = 0x12000, scoped, tag = 'internal scratch']
  %s0 = inlined_call_operand.hbm [shape: f32[2,8,32], index: 0, kind: input, shape index: {}]
  %s1 = inlined_call_operand.hbm [shape: f32[32,96], index: 1, kind: input, shape index: {}]
  %s2 = inlined_call_operand.hbm [shape: f32[32,32], index: 2, kind: input, shape index: {}]
  %s3 = inlined_call_operand.hbm [shape: f32[32,32], index: 3, kind: input, shape index: {}]
  %s4 = inlined_call_operand.vmem [shape: f32[6,32], index: 4, kind: input, shape index: {}]
  %s5 = inlined_call_operand.hbm [shape: f32[2,8,32], index: 5, kind: output, shape index: {}]
  %s6 = sld [smem:[#allocation0]]
  $region69: #{tpu_custom_call.1} parent=0
    _
  %s8 = ssub.s32 1, %s6
  %s9 = scalar_select 0, %s8, %s6
  $region1: #{tpu_custom_call.1} parent=0
    #allocation2 [shape = 'u8[8192]{0}', space=vmem, size = 0x2000, scoped, tag = 'input window, operand 0']
    #allocation3 [shape = 's32[2]{0}', space=sflag, size = 0x8, scoped, tag = 'scoped memory for tpu_custom_call.1']
    #allocation4 [shape = 's32[2]{0}', space=sflag, size = 0x8, scoped, tag = 'scoped memory for tpu_custom_call.1']
    #allocation5 [shape = 'u8[16384]{0}', space=vmem, size = 0x4000, scoped, tag = 'input window, operand 1, single buffered']
    #allocation6 [shape = 's32[1]{0}', space=sflag, size = 0x4, scoped, tag = 'scoped memory for tpu_custom_call.1']
    #allocation7 [shape = 'u8[16384]{0}', space=vmem, size = 0x4000, scoped, tag = 'input window, operand 2, single buffered']
    #allocation8 [shape = 'u8[16384]{0}', space=vmem, size = 0x4000, scoped, tag = 'input window, operand 3, single buffered']
    #allocation9 [shape = 's32[1]{0}', space=sflag, size = 0x4, scoped, tag = 'scoped memory for tpu_custom_call.1']
    #allocation10 [shape = 'u8[8192]{0}', space=vmem, size = 0x2000, scoped, tag = 'output window, operand 0']
    %10 = vsyncpa [#allocation3], 0
    %s11 = scalar_lea.sflag [#allocation3], 1
    %12 = vsyncpa %s11, 0
    %13 = vsyncpa [#allocation6], 0
    %14 = vsyncpa [#allocation9], 0
    %15 = vsyncpa [#allocation4], 0
    %s16 = scalar_lea.sflag [#allocation4], 1
    %17 = vsyncpa %s16, 0
    loop: start=0, step=1, limit=4
    $region2: #{tpu_custom_call.1} parent=1 // loop_pre_header
      _
    $region3: #{tpu_custom_call.1} parent=1 // loop_header
      %s19 = sphi 0, %s23
      %p20 = scmp.ge.s32.totalorder %s19, 4
      %s29 = sphi 0, %s31
      %s32 = sphi 0, %s29
      %s33 = sphi 0, %s32
      %s49 = sphi 0, %s33
      %s53 = sphi 0, %s53
      %s55 = sphi 0, %s53
      %s56 = sphi 0, %s55
      %s70 = sphi 0, %s56
      %s74 = sphi 0, %s74
      %s76 = sphi 0, %s74
      %s77 = sphi 0, %s76
      %s91 = sphi 0, %s77
      %s95 = sphi 0, %s95
      %s97 = sphi 0, %s95
      %s98 = sphi 0, %s97
      %s112 = sphi 0, %s98
      %s116 = sphi 0, %s116
      %s118 = sphi 0, %s116
      %s119 = sphi 0, %s118
      %s133 = sphi 0, %s119
      %s139 = sphi 0, %s141
      %s142 = sphi 0, %s139
      %s143 = sphi 0, %s142
      %s159 = sphi 0, %s143
    $region4: #{tpu_custom_call.1} parent=1 // loop_header_branch
      %22 = sbr.rel (%p20) target = $region8
    $region5: #{tpu_custom_call.1} parent=1 // loop_body
      %s24 = ssub.s32 %s19, 1
      %s25 = ssub.s32 %s19, 2
      %s26 = sadd.s32 %s19, 1
      %s27 = ssub.s32 %s19, %s26
      %p28 = scmp.eq.s32.totalorder %s27, 0
      %s30 = sadd.s32 %s29, 1
      %s31 = scalar_select %p28, %s29, %s30
      %p34 = pneg %p28
      %p35 = scmp.eq.s32.totalorder %s19, 1
      %p36 = por %p34, %p35
      %p37 = scmp.ne.s32.totalorder %s29, %s32
      %p38 = scmp.eq.s32.totalorder %s19, 0
      %p39 = por %p37, %p38
      %p40 = scmp.ne.s32.totalorder %s29, %s32
      %p41 = scmp.eq.s32.totalorder %s24, 1
      %p42 = por %p40, %p41
      %p43 = scmp.ne.s32.totalorder %s32, %s33
      %p44 = scmp.eq.s32.totalorder %s24, 0
      %p45 = por %p43, %p44
      %p46 = scmp.ne.s32.totalorder %s32, %s33
      %p47 = scmp.eq.s32.totalorder %s25, 1
      %p48 = por %p46, %p47
      %p50 = scmp.ne.s32.totalorder %s33, %s49
      %p51 = scmp.eq.s32.totalorder %s25, 0
      %p52 = por %p50, %p51
      %s54 = sadd.s32 %s53, 1
      %p57 = scmp.eq.s32.totalorder %s19, 1
      %p58 = scmp.ne.s32.totalorder %s53, %s55
      %p59 = scmp.eq.s32.totalorder %s19, 0
      %p60 = por %p58, %p59
      %p61 = scmp.ne.s32.totalorder %s53, %s55
      %p62 = scmp.eq.s32.totalorder %s24, 1
      %p63 = por %p61, %p62
      %p64 = scmp.ne.s32.totalorder %s55, %s56
      %p65 = scmp.eq.s32.totalorder %s24, 0
      %p66 = por %p64, %p65
      %p67 = scmp.ne.s32.totalorder %s55, %s56
      %p68 = scmp.eq.s32.totalorder %s25, 1
      %p69 = por %p67, %p68
      %p71 = scmp.ne.s32.totalorder %s56, %s70
      %p72 = scmp.eq.s32.totalorder %s25, 0
      %p73 = por %p71, %p72
      %s75 = sadd.s32 %s74, 1
      %p78 = scmp.eq.s32.totalorder %s19, 1
      %p79 = scmp.ne.s32.totalorder %s74, %s76
      %p80 = scmp.eq.s32.totalorder %s19, 0
      %p81 = por %p79, %p80
      %p82 = scmp.ne.s32.totalorder %s74, %s76
      %p83 = scmp.eq.s32.totalorder %s24, 1
      %p84 = por %p82, %p83
      %p85 = scmp.ne.s32.totalorder %s76, %s77
      %p86 = scmp.eq.s32.totalorder %s24, 0
      %p87 = por %p85, %p86
      %p88 = scmp.ne.s32.totalorder %s76, %s77
      %p89 = scmp.eq.s32.totalorder %s25, 1
      %p90 = por %p88, %p89
      %p92 = scmp.ne.s32.totalorder %s77, %s91
      %p93 = scmp.eq.s32.totalorder %s25, 0
      %p94 = por %p92, %p93
      %s96 = sadd.s32 %s95, 1
      %p99 = scmp.eq.s32.totalorder %s19, 1
      %p100 = scmp.ne.s32.totalorder %s95, %s97
      %p101 = scmp.eq.s32.totalorder %s19, 0
      %p102 = por %p100, %p101
      %p103 = scmp.ne.s32.totalorder %s95, %s97
      %p104 = scmp.eq.s32.totalorder %s24, 1
      %p105 = por %p103, %p104
      %p106 = scmp.ne.s32.totalorder %s97, %s98
      %p107 = scmp.eq.s32.totalorder %s24, 0
      %p108 = por %p106, %p107
      %p109 = scmp.ne.s32.totalorder %s97, %s98
      %p110 = scmp.eq.s32.totalorder %s25, 1
      %p111 = por %p109, %p110
      %p113 = scmp.ne.s32.totalorder %s98, %s112
      %p114 = scmp.eq.s32.totalorder %s25, 0
      %p115 = por %p113, %p114
      %s117 = sadd.s32 %s116, 1
      %p120 = scmp.eq.s32.totalorder %s19, 1
      %p121 = scmp.ne.s32.totalorder %s116, %s118
      %p122 = scmp.eq.s32.totalorder %s19, 0
      %p123 = por %p121, %p122
      %p124 = scmp.ne.s32.totalorder %s116, %s118
      %p125 = scmp.eq.s32.totalorder %s24, 1
      %p126 = por %p124, %p125
      %p127 = scmp.ne.s32.totalorder %s118, %s119
      %p128 = scmp.eq.s32.totalorder %s24, 0
      %p129 = por %p127, %p128
      %p130 = scmp.ne.s32.totalorder %s118, %s119
      %p131 = scmp.eq.s32.totalorder %s25, 1
      %p132 = por %p130, %p131
      %p134 = scmp.ne.s32.totalorder %s119, %s133
      %p135 = scmp.eq.s32.totalorder %s25, 0
      %p136 = por %p134, %p135
      %s137 = ssub.s32 %s19, %s26
      %p138 = scmp.eq.s32.totalorder %s137, 0
      %s140 = sadd.s32 %s139, 1
      %s141 = scalar_select %p138, %s139, %s140
      %p144 = pneg %p138
      %p145 = scmp.eq.s32.totalorder %s19, 1
      %p146 = por %p144, %p145
      %p147 = scmp.ne.s32.totalorder %s139, %s142
      %p148 = scmp.eq.s32.totalorder %s19, 0
      %p149 = por %p147, %p148
      %p150 = scmp.ne.s32.totalorder %s139, %s142
      %p151 = scmp.eq.s32.totalorder %s24, 1
      %p152 = por %p150, %p151
      %p153 = scmp.ne.s32.totalorder %s142, %s143
      %p154 = scmp.eq.s32.totalorder %s24, 0
      %p155 = por %p153, %p154
      %p156 = scmp.ne.s32.totalorder %s142, %s143
      %p157 = scmp.eq.s32.totalorder %s25, 1
      %p158 = por %p156, %p157
      %p160 = scmp.ne.s32.totalorder %s143, %s159
      %p161 = scmp.eq.s32.totalorder %s25, 0
      %p162 = por %p160, %p161
      %p163 = scmp.le.s32.totalorder 1, %s19
      %p164 = scmp.lt.s32.totalorder %s19, 3
      %p165 = pnand %p163, %p164
      %p166 = pneg %p165
      // Predicated region
      $region9: #{tpu_custom_call.1} parent=5 // pred_check
        _
      $region10: #{tpu_custom_call.1} parent=5 // pred_check_branch
        %168 = sbr.rel (%p165) target = $region12
      $region11: #{tpu_custom_call.1} parent=5 // pred_region
        %s169 = ssub.s32 %s19, 1
        // Predicated region
        $region13: #{tpu_custom_call.1} parent=11 // pred_check
          %p170 = pneg %p66
        $region14: #{tpu_custom_call.1} parent=11 // pred_check_branch
          %172 = sbr.rel (%p170) target = $region16
        $region15: #{tpu_custom_call.1} parent=11 // pred_region
          %s174 = ssub.s32 512, 512
          %175 = vsyncadd [#allocation6], %s174
          %s176 = sshll.u32 [#allocation5], 4
          %s177 = int_to_ptr.vmem [resolvable:$true] %s176
          %182 = dma.hbm_to_vmem [thread:$0]  %s1, 512, %s177, [#allocation6], 128, 128, 8
        $region16: #{tpu_custom_call.1} parent=11 // pred_fallthru
          _
        // Predicated region
        $region17: #{tpu_custom_call.1} parent=11 // pred_check
          %p183 = pneg %p87
        $region18: #{tpu_custom_call.1} parent=11 // pred_check_branch
          %185 = sbr.rel (%p183) target = $region20
        $region19: #{tpu_custom_call.1} parent=11 // pred_region
          %s187 = ssub.s32 512, 512
          %188 = vsyncadd [#allocation6], %s187
          %s189 = sshll.u32 [#allocation7], 4
          %s190 = int_to_ptr.vmem [resolvable:$true] %s189
          %195 = dma.hbm_to_vmem [thread:$0]  %s2, 512, %s190, [#allocation6], 128, 128, 8
        $region20: #{tpu_custom_call.1} parent=11 // pred_fallthru
          _
        // Predicated region
        $region21: #{tpu_custom_call.1} parent=11 // pred_check
          %p196 = pneg %p108
        $region22: #{tpu_custom_call.1} parent=11 // pred_check_branch
          %198 = sbr.rel (%p196) target = $region24
        $region23: #{tpu_custom_call.1} parent=11 // pred_region
          %s200 = ssub.s32 512, 512
          %201 = vsyncadd [#allocation9], %s200
          %s202 = sshll.u32 [#allocation8], 4
          %s203 = int_to_ptr.vmem [resolvable:$true] %s202
          %208 = dma.hbm_to_vmem [thread:$0]  %s3, 512, %s203, [#allocation9], 128, 128, 8
        $region24: #{tpu_custom_call.1} parent=11 // pred_fallthru
          _
        // Predicated region
        $region25: #{tpu_custom_call.1} parent=11 // pred_check
          %p209 = pneg %p129
        $region26: #{tpu_custom_call.1} parent=11 // pred_check_branch
          %211 = sbr.rel (%p209) target = $region28
        $region27: #{tpu_custom_call.1} parent=11 // pred_region
          _
        $region28: #{tpu_custom_call.1} parent=11 // pred_fallthru
          _
      $region12: #{tpu_custom_call.1} parent=5 // pred_fallthru
        _
      %p212 = scmp.lt.s32.totalorder %s19, 2
      // Predicated region
      $region29: #{tpu_custom_call.1} parent=5 // pred_check
        %p213 = pneg %p212
      $region30: #{tpu_custom_call.1} parent=5 // pred_check_branch
        %215 = sbr.rel (%p213) target = $region32
      $region31: #{tpu_custom_call.1} parent=5 // pred_region
        // Predicated region
        $region33: #{tpu_custom_call.1} parent=31 // pred_check
          %p216 = pneg %p39
        $region34: #{tpu_custom_call.1} parent=31 // pred_check_branch
          %218 = sbr.rel (%p216) target = $region36
        $region35: #{tpu_custom_call.1} parent=31 // pred_region
          %s219 = sand.u32 %s29, 1
          %s220 = scalar_lea.sflag [#allocation3], %s219
          %s221 = sand.u32 %s29, 1
          %s222 = smul.addr %s221, 8
          %s223 = scalar_lea.vmem [#allocation2], %s222
          %s225 = ssub.s32 128, 128
          %226 = vsyncadd %s220, %s225
          %s227 = smul.addr %s19, 128
          %s228 = scalar_lea.hbm %s0, %s227
          %s230 = sshll.u32 %s223, 4
          %s231 = int_to_ptr.vmem [resolvable:$true] %s230
          %233 = dma.hbm_to_vmem [thread:$0]  %s228, 128, %s231, %s220
        $region36: #{tpu_custom_call.1} parent=31 // pred_fallthru
          _
      $region32: #{tpu_custom_call.1} parent=5 // pred_fallthru
        _
      %p234 = scmp.le.s32.totalorder 1, %s19
      %p235 = scmp.lt.s32.totalorder %s19, 3
      %p236 = pnand %p234, %p235
      %p237 = pneg %p236
      // Predicated region
      $region37: #{tpu_custom_call.1} parent=5 // pred_check
        _
      $region38: #{tpu_custom_call.1} parent=5 // pred_check_branch
        %239 = sbr.rel (%p236) target = $region40
      $region39: #{tpu_custom_call.1} parent=5 // pred_region
        %s240 = ssub.s32 %s19, 1
        %s241 = sand.u32 %s32, 1
        %s242 = scalar_lea.sflag [#allocation3], %s241
        %s243 = sand.u32 %s32, 1
        %s244 = smul.addr %s243, 8
        %s245 = scalar_lea.vmem [#allocation2], %s244
        // Predicated region
        $region41: #{tpu_custom_call.1} parent=39 // pred_check
          %p246 = pneg %p45
        $region42: #{tpu_custom_call.1} parent=39 // pred_check_branch
          %248 = sbr.rel (%p246) target = $region44
        $region43: #{tpu_custom_call.1} parent=39 // pred_region
          %249 = dma.done %s242, 128
        $region44: #{tpu_custom_call.1} parent=39 // pred_fallthru
          _
        // Predicated region
        $region45: #{tpu_custom_call.1} parent=39 // pred_check
          %p250 = pneg %p66
        $region46: #{tpu_custom_call.1} parent=39 // pred_check_branch
          %252 = sbr.rel (%p250) target = $region48
        $region47: #{tpu_custom_call.1} parent=39 // pred_region
          %253 = dma.done [#allocation6], 512
        $region48: #{tpu_custom_call.1} parent=39 // pred_fallthru
          _
        // Predicated region
        $region49: #{tpu_custom_call.1} parent=39 // pred_check
          %p254 = pneg %p87
        $region50: #{tpu_custom_call.1} parent=39 // pred_check_branch
          %256 = sbr.rel (%p254) target = $region52
        $region51: #{tpu_custom_call.1} parent=39 // pred_region
          %257 = dma.done [#allocation6], 512
        $region52: #{tpu_custom_call.1} parent=39 // pred_fallthru
          _
        // Predicated region
        $region53: #{tpu_custom_call.1} parent=39 // pred_check
          %p258 = pneg %p108
        $region54: #{tpu_custom_call.1} parent=39 // pred_check_branch
          %260 = sbr.rel (%p258) target = $region56
        $region55: #{tpu_custom_call.1} parent=39 // pred_region
          %261 = dma.done [#allocation9], 512
        $region56: #{tpu_custom_call.1} parent=39 // pred_fallthru
          _
        %s262 = sand.u32 %s32, 1
        %s263 = scalar_lea.sflag [#allocation3], %s262
        %s264 = sand.u32 %s32, 1
        %s265 = smul.addr %s264, 8
        %s266 = scalar_lea.vmem [#allocation2], %s265
        %p267 = pneg %p45
        %p268 = pneg %p42
        %p269 = pneg %p66
        %p270 = pneg %p63
        %p271 = pneg %p87
        %p272 = pneg %p84
        %p273 = pneg %p108
        %p274 = pneg %p105
        %p275 = pneg %p129
        %p276 = pneg %p126
        %p277 = pneg %p155
        %p278 = pneg %p152
        %s279 = sand.u32 %s142, 1
        %s280 = scalar_lea.sflag [#allocation4], %s279
        %s281 = sand.u32 %s142, 1
        %s282 = smul.addr %s281, 8
        %s283 = scalar_lea.vmem [#allocation10], %s282
        %v284 = vld [vmem:[%s245] sm:$0xff]
        %v285 = vld [vmem:[%s4] sm:$0x3f]
        %vm286 = vcmask 261120
        %v287 = vsel %vm286, %v284, 0.0
        %288 = vadd.xlane.f32.xlu0 %v287
        %v289 = vpop.xlane.xlu0 %288
        %v290 = vrcp.pop 32.0
        %v291 = vmul.f32 %v289, %v290
        %v292 = vsub.f32 %v284, %v291
        %v293 = vmul.f32 %v292, %v292
        %v294 = vsel %vm286, %v293, 0.0
        %295 = vadd.xlane.f32.xlu0 %v294
        %v296 = vpop.xlane.xlu0 %295
        %v297 = vmul.f32 %v296, %v290
        %v298 = vadd.f32 %v297, 1e-05
        %v299 = vrsqrt.pop %v298
        %v300 = vmul.f32 %v292, %v299
        %v301 = vlaneseq
        %v302 = vshrl.u32 %v301, 7
        %v303 = vsub.s32 0, %v302
        %v304 = vrot.slane %v285, %v303
        %v305 = vmul.f32 %v300, %v304
        %v306 = vlaneseq
        %v307 = vshrl.u32 %v306, 7
        %v308 = vsub.s32 1, %v307
        %v309 = vrot.slane %v285, %v308
        %v310 = vadd.f32 %v305, %v309
        %v311 = vld [vmem:[#allocation5] sm:$0xff]
        %v312 = vld [vmem:[#allocation5 + $0x8] sm:$0xff]
        %v313 = vld [vmem:[#allocation5 + $0x10] sm:$0xff]
        %v314 = vld [vmem:[#allocation5 + $0x18] sm:$0xff]
        %v316 = vsel %vm286, %v310, 0
        %318 = vmatprep.subr.mxu0 0.0
        %319 = vmatpush1.msra.mxu0 %v311
        %320 = vmatprep.subr.mxu0 0.0
        %321 = vmatpush1.msra.mxu0 %v312
        %322 = vmatprep.subr.mxu0 0.0
        %323 = vmatpush1.msra.mxu0 %v313
        %324 = vmatprep.subr.mxu0 0.0
        %325 = vmatpush1.msra.mxu0 %v314
        %326 = vmatprep.subr.mxu0 0.0
        %327 = vmatpush1.msra.mxu0 0.0
        %328 = vmatprep.subr.mxu0 0.0
        %329 = vmatpush1.msra.mxu0 0.0
        %330 = vmatprep.subr.mxu0 0.0
        %331 = vmatpush1.msra.mxu0 0.0
        %332 = vmatprep.subr.mxu0 0.0
        %333 = vmatpush1.msra.mxu0 0.0
        %334 = vmatprep.subr.mxu0 0.0
        %335 = vmatpush1.msra.mxu0 0.0
        %336 = vmatprep.subr.mxu0 0.0
        %337 = vmatpush1.msra.mxu0 0.0
        %338 = vmatprep.subr.mxu0 0.0
        %339 = vmatpush1.msra.mxu0 0.0
        %340 = vmatprep.subr.mxu0 0.0
        %341 = vmatpush1.msra.mxu0 0.0
        %342 = vmatprep.subr.mxu0 0.0
        %343 = vmatpush1.msra.mxu0 0.0
        %344 = vmatprep.subr.mxu0 0.0
        %345 = vmatpush1.msra.mxu0 0.0
        %346 = vmatprep.subr.mxu0 0.0
        %347 = vmatpush1.msra.mxu0 0.0
        %348 = vmatprep.subr.mxu0 0.0
        %349 = vmatpush1.msra.mxu0 0.0
        %350 = vmatprep.subr.mxu0 0.0
        %351 = vmatpush1.msra.mxu0 0.0
        %352 = vmatprep.subr.mxu0 0.0
        %353 = vmatpush1.msra.mxu0 0.0
        %354 = vmatprep.subr.mxu0 0.0
        %355 = vmatpush1.msra.mxu0 0.0
        %356 = vmatprep.subr.mxu0 0.0
        %357 = vmatpush1.msra.mxu0 0.0
        %358 = vmatprep.subr.mxu0 0.0
        %359 = vmatpush1.msra.mxu0 0.0
        %360 = vmatprep.subr.mxu0 0.0
        %361 = vmatpush1.msra.mxu0 0.0
        %362 = vmatprep.subr.mxu0 0.0
        %363 = vmatpush1.msra.mxu0 0.0
        %364 = vmatprep.subr.mxu0 0.0
        %365 = vmatpush1.msra.mxu0 0.0
        %366 = vmatprep.subr.mxu0 0.0
        %367 = vmatpush1.msra.mxu0 0.0
        %368 = vmatprep.subr.mxu0 0.0
        %369 = vmatpush1.msra.mxu0 0.0
        %370 = vmatprep.subr.mxu0 0.0
        %371 = vmatpush1.msra.mxu0 0.0
        %372 = vmatprep.subr.mxu0 0.0
        %373 = vmatpush1.msra.mxu0 0.0
        %374 = vmatprep.subr.mxu0 0.0
        %375 = vmatpush1.msra.mxu0 0.0
        %376 = vmatprep.subr.mxu0 0.0
        %377 = vmatpush1.msra.mxu0 0.0
        %378 = vmatprep.subr.mxu0 0.0
        %379 = vmatpush1.msra.mxu0 0.0
        %380 = vmatprep.subr.mxu0 0.0
        %381 = vmatpush1.msra.mxu0 0.0
        %382 = vmatprep.mubr.f32.mxu0 0.0
        %383 = vmatmul.mubr.f32.gmra.mrb[0].mxu0 %v316
        %v384 = vpop.f32.mrb[0].mxu0
        %v385 = vadd.f32 0.0, %v384
        %v386 = vpop.f32.mrb[0].mxu0
        %387 = vdwg.mxu0
        %389 = vrot.lane.b32.xlu0 %v385, 96
        %v390 = vpop.permute.xlu0 %389
        %vm391 = vcmask 64512
        %v392 = vsel %vm391, %v385, 0
        %v394 = vsel %vm391, %v390, 0
        %396 = vmatprep.subr.mxu0 0.0
        %397 = vmatpush1.xpose.msra.mxu0 %v394
        %398 = vmatprep.subr.mxu0 0.0
        %399 = vmatpush1.xpose.msra.mxu0 0.0
        %400 = vmatprep.subr.mxu0 0.0
        %401 = vmatpush1.xpose.msra.mxu0 0.0
        %402 = vmatprep.subr.mxu0 0.0
        %403 = vmatpush1.xpose.msra.mxu0 0.0
        %404 = vmatprep.subr.mxu0 0.0
        %405 = vmatpush1.xpose.msra.mxu0 0.0
        %406 = vmatprep.subr.mxu0 0.0
        %407 = vmatpush1.xpose.msra.mxu0 0.0
        %408 = vmatprep.subr.mxu0 0.0
        %409 = vmatpush1.xpose.msra.mxu0 0.0
        %410 = vmatprep.subr.mxu0 0.0
        %411 = vmatpush1.xpose.msra.mxu0 0.0
        %412 = vmatprep.subr.mxu0 0.0
        %413 = vmatpush1.xpose.msra.mxu0 0.0
        %414 = vmatprep.subr.mxu0 0.0
        %415 = vmatpush1.xpose.msra.mxu0 0.0
        %416 = vmatprep.subr.mxu0 0.0
        %417 = vmatpush1.xpose.msra.mxu0 0.0
        %418 = vmatprep.subr.mxu0 0.0
        %419 = vmatpush1.xpose.msra.mxu0 0.0
        %420 = vmatprep.subr.mxu0 0.0
        %421 = vmatpush1.xpose.msra.mxu0 0.0
        %422 = vmatprep.subr.mxu0 0.0
        %423 = vmatpush1.xpose.msra.mxu0 0.0
        %424 = vmatprep.subr.mxu0 0.0
        %425 = vmatpush1.xpose.msra.mxu0 0.0
        %426 = vmatprep.subr.mxu0 0.0
        %427 = vmatpush1.xpose.msra.mxu0 0.0
        %428 = vmatprep.subr.mxu0 0.0
        %429 = vmatpush1.xpose.msra.mxu0 0.0
        %430 = vmatprep.subr.mxu0 0.0
        %431 = vmatpush1.xpose.msra.mxu0 0.0
        %432 = vmatprep.subr.mxu0 0.0
        %433 = vmatpush1.xpose.msra.mxu0 0.0
        %434 = vmatprep.subr.mxu0 0.0
        %435 = vmatpush1.xpose.msra.mxu0 0.0
        %436 = vmatprep.subr.mxu0 0.0
        %437 = vmatpush1.xpose.msra.mxu0 0.0
        %438 = vmatprep.subr.mxu0 0.0
        %439 = vmatpush1.xpose.msra.mxu0 0.0
        %440 = vmatprep.subr.mxu0 0.0
        %441 = vmatpush1.xpose.msra.mxu0 0.0
        %442 = vmatprep.subr.mxu0 0.0
        %443 = vmatpush1.xpose.msra.mxu0 0.0
        %444 = vmatprep.subr.mxu0 0.0
        %445 = vmatpush1.xpose.msra.mxu0 0.0
        %446 = vmatprep.subr.mxu0 0.0
        %447 = vmatpush1.xpose.msra.mxu0 0.0
        %448 = vmatprep.subr.mxu0 0.0
        %449 = vmatpush1.xpose.msra.mxu0 0.0
        %450 = vmatprep.subr.mxu0 0.0
        %451 = vmatpush1.xpose.msra.mxu0 0.0
        %452 = vmatprep.subr.mxu0 0.0
        %453 = vmatpush1.xpose.msra.mxu0 0.0
        %454 = vmatprep.subr.mxu0 0.0
        %455 = vmatpush1.xpose.msra.mxu0 0.0
        %456 = vmatprep.subr.mxu0 0.0
        %457 = vmatpush1.xpose.msra.mxu0 0.0
        %458 = vmatprep.subr.mxu0 0.0
        %459 = vmatpush1.xpose.msra.mxu0 0.0
        %460 = vmatprep.mubr.f32.mxu0 0.0
        %461 = vmatmul.mubr.f32.gmra.mrb[0].mxu0 %v392
        %v462 = vpop.f32.mrb[0].mxu0
        %v463 = vadd.f32 0.0, %v462
        %v464 = vpop.f32.mrb[0].mxu0
        %465 = vdwg.mxu0
        %v466 = vsel %vm391, %v463, -inf
        %467 = vmax.xlane.f32.xlu0 %v466
        %v468 = vpop.xlane.xlu0 %467
        %v469 = vsub.f32 %v463, %v468
        %v470 = vmul.f32 %v469, 1.442695
        %v471 = vpow.pop %v470
        %v472 = vsel %vm391, %v471, 0.0
        %473 = vadd.xlane.f32.xlu0 %v472
        %v474 = vpop.xlane.xlu0 %473
        %v475 = vrcp.pop %v474
        %476 = vrot.lane.b32.xlu0 %v385, 64
        %v477 = vpop.permute.xlu0 %476
        %v480 = vsel %vm391, %v471, 0
        %482 = vmatprep.subr.mxu0 0.0
        %483 = vmatpush1.msra.mxu0 %v477
        %484 = vmatprep.subr.mxu0 0.0
        %485 = vmatpush1.msra.mxu0 0.0
        %486 = vmatprep.subr.mxu0 0.0
        %487 = vmatpush1.msra.mxu0 0.0
        %488 = vmatprep.subr.mxu0 0.0
        %489 = vmatpush1.msra.mxu0 0.0
        %490 = vmatprep.subr.mxu0 0.0
        %491 = vmatpush1.msra.mxu0 0.0
        %492 = vmatprep.subr.mxu0 0.0
        %493 = vmatpush1.msra.mxu0 0.0
        %494 = vmatprep.subr.mxu0 0.0
        %495 = vmatpush1.msra.mxu0 0.0
        %496 = vmatprep.subr.mxu0 0.0
        %497 = vmatpush1.msra.mxu0 0.0
        %498 = vmatprep.subr.mxu0 0.0
        %499 = vmatpush1.msra.mxu0 0.0
        %500 = vmatprep.subr.mxu0 0.0
        %501 = vmatpush1.msra.mxu0 0.0
        %502 = vmatprep.subr.mxu0 0.0
        %503 = vmatpush1.msra.mxu0 0.0
        %504 = vmatprep.subr.mxu0 0.0
        %505 = vmatpush1.msra.mxu0 0.0
        %506 = vmatprep.subr.mxu0 0.0
        %507 = vmatpush1.msra.mxu0 0.0
        %508 = vmatprep.subr.mxu0 0.0
        %509 = vmatpush1.msra.mxu0 0.0
        %510 = vmatprep.subr.mxu0 0.0
        %511 = vmatpush1.msra.mxu0 0.0
        %512 = vmatprep.subr.mxu0 0.0
        %513 = vmatpush1.msra.mxu0 0.0
        %514 = vmatprep.subr.mxu0 0.0
        %515 = vmatpush1.msra.mxu0 0.0
        %516 = vmatprep.subr.mxu0 0.0
        %517 = vmatpush1.msra.mxu0 0.0
        %518 = vmatprep.subr.mxu0 0.0
        %519 = vmatpush1.msra.mxu0 0.0
        %520 = vmatprep.subr.mxu0 0.0
        %521 = vmatpush1.msra.mxu0 0.0
        %522 = vmatprep.subr.mxu0 0.0
        %523 = vmatpush1.msra.mxu0 0.0
        %524 = vmatprep.subr.mxu0 0.0
        %525 = vmatpush1.msra.mxu0 0.0
        %526 = vmatprep.subr.mxu0 0.0
        %527 = vmatpush1.msra.mxu0 0.0
        %528 = vmatprep.subr.mxu0 0.0
        %529 = vmatpush1.msra.mxu0 0.0
        %530 = vmatprep.subr.mxu0 0.0
        %531 = vmatpush1.msra.mxu0 0.0
        %532 = vmatprep.subr.mxu0 0.0
        %533 = vmatpush1.msra.mxu0 0.0
        %534 = vmatprep.subr.mxu0 0.0
        %535 = vmatpush1.msra.mxu0 0.0
        %536 = vmatprep.subr.mxu0 0.0
        %537 = vmatpush1.msra.mxu0 0.0
        %538 = vmatprep.subr.mxu0 0.0
        %539 = vmatpush1.msra.mxu0 0.0
        %540 = vmatprep.subr.mxu0 0.0
        %541 = vmatpush1.msra.mxu0 0.0
        %542 = vmatprep.subr.mxu0 0.0
        %543 = vmatpush1.msra.mxu0 0.0
        %544 = vmatprep.subr.mxu0 0.0
        %545 = vmatpush1.msra.mxu0 0.0
        %546 = vmatprep.mubr.f32.mxu0 0.0
        %547 = vmatmul.mubr.f32.gmra.mrb[0].mxu0 %v480
        %v548 = vpop.f32.mrb[0].mxu0
        %v549 = vadd.f32 0.0, %v548
        %v550 = vpop.f32.mrb[0].mxu0
        %551 = vdwg.mxu0
        %v552 = vmul.f32 %v549, %v475
        %v553 = vld [vmem:[#allocation7] sm:$0xff]
        %554 = vrot.lane.b32.xlu0 %v385, 120
        %v555 = vpop.permute.xlu0 %554
        %556 = vrot.lane.b32.xlu0 %v385, 88
        %v557 = vpop.permute.xlu0 %556
        %v558 = vsel %vm391, %v555, 0
        %v560 = vsel %vm391, %v557, 0
        %562 = vmatprep.subr.mxu0 0.0
        %563 = vmatpush1.xpose.msra.mxu0 %v560
        %564 = vmatprep.subr.mxu0 0.0
        %565 = vmatpush1.xpose.msra.mxu0 0.0
        %566 = vmatprep.subr.mxu0 0.0
        %567 = vmatpush1.xpose.msra.mxu0 0.0
        %568 = vmatprep.subr.mxu0 0.0
        %569 = vmatpush1.xpose.msra.mxu0 0.0
        %570 = vmatprep.subr.mxu0 0.0
        %571 = vmatpush1.xpose.msra.mxu0 0.0
        %572 = vmatprep.subr.mxu0 0.0
        %573 = vmatpush1.xpose.msra.mxu0 0.0
        %574 = vmatprep.subr.mxu0 0.0
        %575 = vmatpush1.xpose.msra.mxu0 0.0
        %576 = vmatprep.subr.mxu0 0.0
        %577 = vmatpush1.xpose.msra.mxu0 0.0
        %578 = vmatprep.subr.mxu0 0.0
        %579 = vmatpush1.xpose.msra.mxu0 0.0
        %580 = vmatprep.subr.mxu0 0.0
        %581 = vmatpush1.xpose.msra.mxu0 0.0
        %582 = vmatprep.subr.mxu0 0.0
        %583 = vmatpush1.xpose.msra.mxu0 0.0
        %584 = vmatprep.subr.mxu0 0.0
        %585 = vmatpush1.xpose.msra.mxu0 0.0
        %586 = vmatprep.subr.mxu0 0.0
        %587 = vmatpush1.xpose.msra.mxu0 0.0
        %588 = vmatprep.subr.mxu0 0.0
        %589 = vmatpush1.xpose.msra.mxu0 0.0
        %590 = vmatprep.subr.mxu0 0.0
        %591 = vmatpush1.xpose.msra.mxu0 0.0
        %592 = vmatprep.subr.mxu0 0.0
        %593 = vmatpush1.xpose.msra.mxu0 0.0
        %594 = vmatprep.subr.mxu0 0.0
        %595 = vmatpush1.xpose.msra.mxu0 0.0
        %596 = vmatprep.subr.mxu0 0.0
        %597 = vmatpush1.xpose.msra.mxu0 0.0
        %598 = vmatprep.subr.mxu0 0.0
        %599 = vmatpush1.xpose.msra.mxu0 0.0
        %600 = vmatprep.subr.mxu0 0.0
        %601 = vmatpush1.xpose.msra.mxu0 0.0
        %602 = vmatprep.subr.mxu0 0.0
        %603 = vmatpush1.xpose.msra.mxu0 0.0
        %604 = vmatprep.subr.mxu0 0.0
        %605 = vmatpush1.xpose.msra.mxu0 0.0
        %606 = vmatprep.subr.mxu0 0.0
        %607 = vmatpush1.xpose.msra.mxu0 0.0
        %608 = vmatprep.subr.mxu0 0.0
        %609 = vmatpush1.xpose.msra.mxu0 0.0
        %610 = vmatprep.subr.mxu0 0.0
        %611 = vmatpush1.xpose.msra.mxu0 0.0
        %612 = vmatprep.subr.mxu0 0.0
        %613 = vmatpush1.xpose.msra.mxu0 0.0
        %614 = vmatprep.subr.mxu0 0.0
        %615 = vmatpush1.xpose.msra.mxu0 0.0
        %616 = vmatprep.subr.mxu0 0.0
        %617 = vmatpush1.xpose.msra.mxu0 0.0
        %618 = vmatprep.subr.mxu0 0.0
        %619 = vmatpush1.xpose.msra.mxu0 0.0
        %620 = vmatprep.subr.mxu0 0.0
        %621 = vmatpush1.xpose.msra.mxu0 0.0
        %622 = vmatprep.subr.mxu0 0.0
        %623 = vmatpush1.xpose.msra.mxu0 0.0
        %624 = vmatprep.subr.mxu0 0.0
        %625 = vmatpush1.xpose.msra.mxu0 0.0
        %626 = vmatprep.mubr.f32.mxu0 0.0
        %627 = vmatmul.mubr.f32.gmra.mrb[0].mxu0 %v558
        %v628 = vpop.f32.mrb[0].mxu0
        %v629 = vadd.f32 0.0, %v628
        %v630 = vpop.f32.mrb[0].mxu0
        %631 = vdwg.mxu0
        %v632 = vsel %vm391, %v629, -inf
        %633 = vmax.xlane.f32.xlu0 %v632
        %v634 = vpop.xlane.xlu0 %633
        %v635 = vsub.f32 %v629, %v634
        %v636 = vmul.f32 %v635, 1.442695
        %v637 = vpow.pop %v636
        %v638 = vsel %vm391, %v637, 0.0
        %639 = vadd.xlane.f32.xlu0 %v638
        %v640 = vpop.xlane.xlu0 %639
        %v641 = vrcp.pop %v640
        %642 = vrot.lane.b32.xlu0 %v385, 56
        %v643 = vpop.permute.xlu0 %642
        %v646 = vsel %vm391, %v637, 0
        %648 = vmatprep.subr.mxu0 0.0
        %649 = vmatpush1.msra.mxu0 %v643
        %650 = vmatprep.subr.mxu0 0.0
        %651 = vmatpush1.msra.mxu0 0.0
        %652 = vmatprep.subr.mxu0 0.0
        %653 = vmatpush1.msra.mxu0 0.0
        %654 = vmatprep.subr.mxu0 0.0
        %655 = vmatpush1.msra.mxu0 0.0
        %656 = vmatprep.subr.mxu0 0.0
        %657 = vmatpush1.msra.mxu0 0.0
        %658 = vmatprep.subr.mxu0 0.0
        %659 = vmatpush1.msra.mxu0 0.0
        %660 = vmatprep.subr.mxu0 0.0
        %661 = vmatpush1.msra.mxu0 0.0
        %662 = vmatprep.subr.mxu0 0.0
        %663 = vmatpush1.msra.mxu0 0.0
        %664 = vmatprep.subr.mxu0 0.0
        %665 = vmatpush1.msra.mxu0 0.0
        %666 = vmatprep.subr.mxu0 0.0
        %667 = vmatpush1.msra.mxu0 0.0
        %668 = vmatprep.subr.mxu0 0.0
        %669 = vmatpush1.msra.mxu0 0.0
        %670 = vmatprep.subr.mxu0 0.0
        %671 = vmatpush1.msra.mxu0 0.0
        %672 = vmatprep.subr.mxu0 0.0
        %673 = vmatpush1.msra.mxu0 0.0
        %674 = vmatprep.subr.mxu0 0.0
        %675 = vmatpush1.msra.mxu0 0.0
        %676 = vmatprep.subr.mxu0 0.0
        %677 = vmatpush1.msra.mxu0 0.0
        %678 = vmatprep.subr.mxu0 0.0
        %679 = vmatpush1.msra.mxu0 0.0
        %680 = vmatprep.subr.mxu0 0.0
        %681 = vmatpush1.msra.mxu0 0.0
        %682 = vmatprep.subr.mxu0 0.0
        %683 = vmatpush1.msra.mxu0 0.0
        %684 = vmatprep.subr.mxu0 0.0
        %685 = vmatpush1.msra.mxu0 0.0
        %686 = vmatprep.subr.mxu0 0.0
        %687 = vmatpush1.msra.mxu0 0.0
        %688 = vmatprep.subr.mxu0 0.0
        %689 = vmatpush1.msra.mxu0 0.0
        %690 = vmatprep.subr.mxu0 0.0
        %691 = vmatpush1.msra.mxu0 0.0
        %692 = vmatprep.subr.mxu0 0.0
        %693 = vmatpush1.msra.mxu0 0.0
        %694 = vmatprep.subr.mxu0 0.0
        %695 = vmatpush1.msra.mxu0 0.0
        %696 = vmatprep.subr.mxu0 0.0
        %697 = vmatpush1.msra.mxu0 0.0
        %698 = vmatprep.subr.mxu0 0.0
        %699 = vmatpush1.msra.mxu0 0.0
        %700 = vmatprep.subr.mxu0 0.0
        %701 = vmatpush1.msra.mxu0 0.0
        %702 = vmatprep.subr.mxu0 0.0
        %703 = vmatpush1.msra.mxu0 0.0
        %704 = vmatprep.subr.mxu0 0.0
        %705 = vmatpush1.msra.mxu0 0.0
        %706 = vmatprep.subr.mxu0 0.0
        %707 = vmatpush1.msra.mxu0 0.0
        %708 = vmatprep.subr.mxu0 0.0
        %709 = vmatpush1.msra.mxu0 0.0
        %710 = vmatprep.subr.mxu0 0.0
        %711 = vmatpush1.msra.mxu0 0.0
        %712 = vmatprep.mubr.f32.mxu0 0.0
        %713 = vmatmul.mubr.f32.gmra.mrb[0].mxu0 %v646
        %v714 = vpop.f32.mrb[0].mxu0
        %v715 = vadd.f32 0.0, %v714
        %v716 = vpop.f32.mrb[0].mxu0
        %717 = vdwg.mxu0
        %v718 = vmul.f32 %v715, %v641
        %v719 = vld [vmem:[#allocation7 + $0x8] sm:$0xff]
        %v721 = vsel %vm391, %v718, 0
        %723 = vmatprep.subr.mxu0 0.0
        %724 = vmatpush1.msra.mxu0 %v719
        %725 = vmatprep.subr.mxu0 0.0
        %726 = vmatpush1.msra.mxu0 0.0
        %727 = vmatprep.subr.mxu0 0.0
        %728 = vmatpush1.msra.mxu0 0.0
        %729 = vmatprep.subr.mxu0 0.0
        %730 = vmatpush1.msra.mxu0 0.0
        %731 = vmatprep.subr.mxu0 0.0
        %732 = vmatpush1.msra.mxu0 0.0
        %733 = vmatprep.subr.mxu0 0.0
        %734 = vmatpush1.msra.mxu0 0.0
        %735 = vmatprep.subr.mxu0 0.0
        %736 = vmatpush1.msra.mxu0 0.0
        %737 = vmatprep.subr.mxu0 0.0
        %738 = vmatpush1.msra.mxu0 0.0
        %739 = vmatprep.subr.mxu0 0.0
        %740 = vmatpush1.msra.mxu0 0.0
        %741 = vmatprep.subr.mxu0 0.0
        %742 = vmatpush1.msra.mxu0 0.0
        %743 = vmatprep.subr.mxu0 0.0
        %744 = vmatpush1.msra.mxu0 0.0
        %745 = vmatprep.subr.mxu0 0.0
        %746 = vmatpush1.msra.mxu0 0.0
        %747 = vmatprep.subr.mxu0 0.0
        %748 = vmatpush1.msra.mxu0 0.0
        %749 = vmatprep.subr.mxu0 0.0
        %750 = vmatpush1.msra.mxu0 0.0
        %751 = vmatprep.subr.mxu0 0.0
        %752 = vmatpush1.msra.mxu0 0.0
        %753 = vmatprep.subr.mxu0 0.0
        %754 = vmatpush1.msra.mxu0 0.0
        %755 = vmatprep.subr.mxu0 0.0
        %756 = vmatpush1.msra.mxu0 0.0
        %757 = vmatprep.subr.mxu0 0.0
        %758 = vmatpush1.msra.mxu0 0.0
        %759 = vmatprep.subr.mxu0 0.0
        %760 = vmatpush1.msra.mxu0 0.0
        %761 = vmatprep.subr.mxu0 0.0
        %762 = vmatpush1.msra.mxu0 0.0
        %763 = vmatprep.subr.mxu0 0.0
        %764 = vmatpush1.msra.mxu0 0.0
        %765 = vmatprep.subr.mxu0 0.0
        %766 = vmatpush1.msra.mxu0 0.0
        %767 = vmatprep.subr.mxu0 0.0
        %768 = vmatpush1.msra.mxu0 0.0
        %769 = vmatprep.subr.mxu0 0.0
        %770 = vmatpush1.msra.mxu0 0.0
        %771 = vmatprep.subr.mxu0 0.0
        %772 = vmatpush1.msra.mxu0 0.0
        %773 = vmatprep.subr.mxu0 0.0
        %774 = vmatpush1.msra.mxu0 0.0
        %775 = vmatprep.subr.mxu0 0.0
        %776 = vmatpush1.msra.mxu0 0.0
        %777 = vmatprep.subr.mxu0 0.0
        %778 = vmatpush1.msra.mxu0 0.0
        %779 = vmatprep.subr.mxu0 0.0
        %780 = vmatpush1.msra.mxu0 0.0
        %781 = vmatprep.subr.mxu0 0.0
        %782 = vmatpush1.msra.mxu0 0.0
        %783 = vmatprep.subr.mxu0 0.0
        %784 = vmatpush1.msra.mxu0 0.0
        %785 = vmatprep.subr.mxu0 0.0
        %786 = vmatpush1.msra.mxu0 0.0
        %787 = vmatprep.mubr.f32.mxu0 0.0
        %788 = vmatmul.mubr.f32.gmra.mrb[0].mxu0 %v721
        %v789 = vpop.f32.mrb[0].mxu0
        %v790 = vadd.f32 0.0, %v789
        %v791 = vpop.f32.mrb[0].mxu0
        %792 = vdwg.mxu0
        %v794 = vsel %vm391, %v552, 0
        %796 = vmatprep.subr.mxu0 0.0
        %797 = vmatpush1.msra.mxu0 %v553
        %798 = vmatprep.subr.mxu0 0.0
        %799 = vmatpush1.msra.mxu0 0.0
        %800 = vmatprep.subr.mxu0 0.0
        %801 = vmatpush1.msra.mxu0 0.0
        %802 = vmatprep.subr.mxu0 0.0
        %803 = vmatpush1.msra.mxu0 0.0
        %804 = vmatprep.subr.mxu0 0.0
        %805 = vmatpush1.msra.mxu0 0.0
        %806 = vmatprep.subr.mxu0 0.0
        %807 = vmatpush1.msra.mxu0 0.0
        %808 = vmatprep.subr.mxu0 0.0
        %809 = vmatpush1.msra.mxu0 0.0
        %810 = vmatprep.subr.mxu0 0.0
        %811 = vmatpush1.msra.mxu0 0.0
        %812 = vmatprep.subr.mxu0 0.0
        %813 = vmatpush1.msra.mxu0 0.0
        %814 = vmatprep.subr.mxu0 0.0
        %815 = vmatpush1.msra.mxu0 0.0
        %816 = vmatprep.subr.mxu0 0.0
        %817 = vmatpush1.msra.mxu0 0.0
        %818 = vmatprep.subr.mxu0 0.0
        %819 = vmatpush1.msra.mxu0 0.0
        %820 = vmatprep.subr.mxu0 0.0
        %821 = vmatpush1.msra.mxu0 0.0
        %822 = vmatprep.subr.mxu0 0.0
        %823 = vmatpush1.msra.mxu0 0.0
        %824 = vmatprep.subr.mxu0 0.0
        %825 = vmatpush1.msra.mxu0 0.0
        %826 = vmatprep.subr.mxu0 0.0
        %827 = vmatpush1.msra.mxu0 0.0
        %828 = vmatprep.subr.mxu0 0.0
        %829 = vmatpush1.msra.mxu0 0.0
        %830 = vmatprep.subr.mxu0 0.0
        %831 = vmatpush1.msra.mxu0 0.0
        %832 = vmatprep.subr.mxu0 0.0
        %833 = vmatpush1.msra.mxu0 0.0
        %834 = vmatprep.subr.mxu0 0.0
        %835 = vmatpush1.msra.mxu0 0.0
        %836 = vmatprep.subr.mxu0 0.0
        %837 = vmatpush1.msra.mxu0 0.0
        %838 = vmatprep.subr.mxu0 0.0
        %839 = vmatpush1.msra.mxu0 0.0
        %840 = vmatprep.subr.mxu0 0.0
        %841 = vmatpush1.msra.mxu0 0.0
        %842 = vmatprep.subr.mxu0 0.0
        %843 = vmatpush1.msra.mxu0 0.0
        %844 = vmatprep.subr.mxu0 0.0
        %845 = vmatpush1.msra.mxu0 0.0
        %846 = vmatprep.subr.mxu0 0.0
        %847 = vmatpush1.msra.mxu0 0.0
        %848 = vmatprep.subr.mxu0 0.0
        %849 = vmatpush1.msra.mxu0 0.0
        %850 = vmatprep.subr.mxu0 0.0
        %851 = vmatpush1.msra.mxu0 0.0
        %852 = vmatprep.subr.mxu0 0.0
        %853 = vmatpush1.msra.mxu0 0.0
        %854 = vmatprep.subr.mxu0 0.0
        %855 = vmatpush1.msra.mxu0 0.0
        %856 = vmatprep.subr.mxu0 0.0
        %857 = vmatpush1.msra.mxu0 0.0
        %858 = vmatprep.subr.mxu0 0.0
        %859 = vmatpush1.msra.mxu0 0.0
        %860 = vmatprep.mubr.f32.mxu0 0.0
        %861 = vmatmul.mubr.f32.gmra.mrb[0].mxu0 %v794
        %v862 = vpop.f32.mrb[0].mxu0
        %v863 = vadd.f32 %v790, %v862
        %v864 = vpop.f32.mrb[0].mxu0
        %865 = vdwg.mxu0
        %866 = vrot.lane.b32.xlu0 %v385, 112
        %v867 = vpop.permute.xlu0 %866
        %868 = vrot.lane.b32.xlu0 %v385, 80
        %v869 = vpop.permute.xlu0 %868
        %v870 = vsel %vm391, %v867, 0
        %v872 = vsel %vm391, %v869, 0
        %874 = vmatprep.subr.mxu0 0.0
        %875 = vmatpush1.xpose.msra.mxu0 %v872
        %876 = vmatprep.subr.mxu0 0.0
        %877 = vmatpush1.xpose.msra.mxu0 0.0
        %878 = vmatprep.subr.mxu0 0.0
        %879 = vmatpush1.xpose.msra.mxu0 0.0
        %880 = vmatprep.subr.mxu0 0.0
        %881 = vmatpush1.xpose.msra.mxu0 0.0
        %882 = vmatprep.subr.mxu0 0.0
        %883 = vmatpush1.xpose.msra.mxu0 0.0
        %884 = vmatprep.subr.mxu0 0.0
        %885 = vmatpush1.xpose.msra.mxu0 0.0
        %886 = vmatprep.subr.mxu0 0.0
        %887 = vmatpush1.xpose.msra.mxu0 0.0
        %888 = vmatprep.subr.mxu0 0.0
        %889 = vmatpush1.xpose.msra.mxu0 0.0
        %890 = vmatprep.subr.mxu0 0.0
        %891 = vmatpush1.xpose.msra.mxu0 0.0
        %892 = vmatprep.subr.mxu0 0.0
        %893 = vmatpush1.xpose.msra.mxu0 0.0
        %894 = vmatprep.subr.mxu0 0.0
        %895 = vmatpush1.xpose.msra.mxu0 0.0
        %896 = vmatprep.subr.mxu0 0.0
        %897 = vmatpush1.xpose.msra.mxu0 0.0
        %898 = vmatprep.subr.mxu0 0.0
        %899 = vmatpush1.xpose.msra.mxu0 0.0
        %900 = vmatprep.subr.mxu0 0.0
        %901 = vmatpush1.xpose.msra.mxu0 0.0
        %902 = vmatprep.subr.mxu0 0.0
        %903 = vmatpush1.xpose.msra.mxu0 0.0
        %904 = vmatprep.subr.mxu0 0.0
        %905 = vmatpush1.xpose.msra.mxu0 0.0
        %906 = vmatprep.subr.mxu0 0.0
        %907 = vmatpush1.xpose.msra.mxu0 0.0
        %908 = vmatprep.subr.mxu0 0.0
        %909 = vmatpush1.xpose.msra.mxu0 0.0
        %910 = vmatprep.subr.mxu0 0.0
        %911 = vmatpush1.xpose.msra.mxu0 0.0
        %912 = vmatprep.subr.mxu0 0.0
        %913 = vmatpush1.xpose.msra.mxu0 0.0
        %914 = vmatprep.subr.mxu0 0.0
        %915 = vmatpush1.xpose.msra.mxu0 0.0
        %916 = vmatprep.subr.mxu0 0.0
        %917 = vmatpush1.xpose.msra.mxu0 0.0
        %918 = vmatprep.subr.mxu0 0.0
        %919 = vmatpush1.xpose.msra.mxu0 0.0
        %920 = vmatprep.subr.mxu0 0.0
        %921 = vmatpush1.xpose.msra.mxu0 0.0
        %922 = vmatprep.subr.mxu0 0.0
        %923 = vmatpush1.xpose.msra.mxu0 0.0
        %924 = vmatprep.subr.mxu0 0.0
        %925 = vmatpush1.xpose.msra.mxu0 0.0
        %926 = vmatprep.subr.mxu0 0.0
        %927 = vmatpush1.xpose.msra.mxu0 0.0
        %928 = vmatprep.subr.mxu0 0.0
        %929 = vmatpush1.xpose.msra.mxu0 0.0
        %930 = vmatprep.subr.mxu0 0.0
        %931 = vmatpush1.xpose.msra.mxu0 0.0
        %932 = vmatprep.subr.mxu0 0.0
        %933 = vmatpush1.xpose.msra.mxu0 0.0
        %934 = vmatprep.subr.mxu0 0.0
        %935 = vmatpush1.xpose.msra.mxu0 0.0
        %936 = vmatprep.subr.mxu0 0.0
        %937 = vmatpush1.xpose.msra.mxu0 0.0
        %938 = vmatprep.mubr.f32.mxu0 0.0
        %939 = vmatmul.mubr.f32.gmra.mrb[0].mxu0 %v870
        %v940 = vpop.f32.mrb[0].mxu0
        %v941 = vadd.f32 0.0, %v940
        %v942 = vpop.f32.mrb[0].mxu0
        %943 = vdwg.mxu0
        %v944 = vsel %vm391, %v941, -inf
        %945 = vmax.xlane.f32.xlu0 %v944
        %v946 = vpop.xlane.xlu0 %945
        %v947 = vsub.f32 %v941, %v946
        %v948 = vmul.f32 %v947, 1.442695
        %v949 = vpow.pop %v948
        %v950 = vsel %vm391, %v949, 0.0
        %951 = vadd.xlane.f32.xlu0 %v950
        %v952 = vpop.xlane.xlu0 %951
        %v953 = vrcp.pop %v952
        %954 = vrot.lane.b32.xlu0 %v385, 48
        %v955 = vpop.permute.xlu0 %954
        %v958 = vsel %vm391, %v949, 0
        %960 = vmatprep.subr.mxu0 0.0
        %961 = vmatpush1.msra.mxu0 %v955
        %962 = vmatprep.subr.mxu0 0.0
        %963 = vmatpush1.msra.mxu0 0.0
        %964 = vmatprep.subr.mxu0 0.0
        %965 = vmatpush1.msra.mxu0 0.0
        %966 = vmatprep.subr.mxu0 0.0
        %967 = vmatpush1.msra.mxu0 0.0
        %968 = vmatprep.subr.mxu0 0.0
        %969 = vmatpush1.msra.mxu0 0.0
        %970 = vmatprep.subr.mxu0 0.0
        %971 = vmatpush1.msra.mxu0 0.0
        %972 = vmatprep.subr.mxu0 0.0
        %973 = vmatpush1.msra.mxu0 0.0
        %974 = vmatprep.subr.mxu0 0.0
        %975 = vmatpush1.msra.mxu0 0.0
        %976 = vmatprep.subr.mxu0 0.0
        %977 = vmatpush1.msra.mxu0 0.0
        %978 = vmatprep.subr.mxu0 0.0
        %979 = vmatpush1.msra.mxu0 0.0
        %980 = vmatprep.subr.mxu0 0.0
        %981 = vmatpush1.msra.mxu0 0.0
        %982 = vmatprep.subr.mxu0 0.0
        %983 = vmatpush1.msra.mxu0 0.0
        %984 = vmatprep.subr.mxu0 0.0
        %985 = vmatpush1.msra.mxu0 0.0
        %986 = vmatprep.subr.mxu0 0.0
        %987 = vmatpush1.msra.mxu0 0.0
        %988 = vmatprep.subr.mxu0 0.0
        %989 = vmatpush1.msra.mxu0 0.0
        %990 = vmatprep.subr.mxu0 0.0
        %991 = vmatpush1.msra.mxu0 0.0
        %992 = vmatprep.subr.mxu0 0.0
        %993 = vmatpush1.msra.mxu0 0.0
        %994 = vmatprep.subr.mxu0 0.0
        %995 = vmatpush1.msra.mxu0 0.0
        %996 = vmatprep.subr.mxu0 0.0
        %997 = vmatpush1.msra.mxu0 0.0
        %998 = vmatprep.subr.mxu0 0.0
        %999 = vmatpush1.msra.mxu0 0.0
        %1000 = vmatprep.subr.mxu0 0.0
        %1001 = vmatpush1.msra.mxu0 0.0
        %1002 = vmatprep.subr.mxu0 0.0
        %1003 = vmatpush1.msra.mxu0 0.0
        %1004 = vmatprep.subr.mxu0 0.0
        %1005 = vmatpush1.msra.mxu0 0.0
        %1006 = vmatprep.subr.mxu0 0.0
        %1007 = vmatpush1.msra.mxu0 0.0
        %1008 = vmatprep.subr.mxu0 0.0
        %1009 = vmatpush1.msra.mxu0 0.0
        %1010 = vmatprep.subr.mxu0 0.0
        %1011 = vmatpush1.msra.mxu0 0.0
        %1012 = vmatprep.subr.mxu0 0.0
        %1013 = vmatpush1.msra.mxu0 0.0
        %1014 = vmatprep.subr.mxu0 0.0
        %1015 = vmatpush1.msra.mxu0 0.0
        %1016 = vmatprep.subr.mxu0 0.0
        %1017 = vmatpush1.msra.mxu0 0.0
        %1018 = vmatprep.subr.mxu0 0.0
        %1019 = vmatpush1.msra.mxu0 0.0
        %1020 = vmatprep.subr.mxu0 0.0
        %1021 = vmatpush1.msra.mxu0 0.0
        %1022 = vmatprep.subr.mxu0 0.0
        %1023 = vmatpush1.msra.mxu0 0.0
        %1024 = vmatprep.mubr.f32.mxu0 0.0
        %1025 = vmatmul.mubr.f32.gmra.mrb[0].mxu0 %v958
        %v1026 = vpop.f32.mrb[0].mxu0
        %v1027 = vadd.f32 0.0, %v1026
        %v1028 = vpop.f32.mrb[0].mxu0
        %1029 = vdwg.mxu0
        %v1030 = vmul.f32 %v1027, %v953
        %v1031 = vld [vmem:[#allocation7 + $0x10] sm:$0xff]
        %v1033 = vsel %vm391, %v1030, 0
        %1035 = vmatprep.subr.mxu0 0.0
        %1036 = vmatpush1.msra.mxu0 %v1031
        %1037 = vmatprep.subr.mxu0 0.0
        %1038 = vmatpush1.msra.mxu0 0.0
        %1039 = vmatprep.subr.mxu0 0.0
        %1040 = vmatpush1.msra.mxu0 0.0
        %1041 = vmatprep.subr.mxu0 0.0
        %1042 = vmatpush1.msra.mxu0 0.0
        %1043 = vmatprep.subr.mxu0 0.0
        %1044 = vmatpush1.msra.mxu0 0.0
        %1045 = vmatprep.subr.mxu0 0.0
        %1046 = vmatpush1.msra.mxu0 0.0
        %1047 = vmatprep.subr.mxu0 0.0
        %1048 = vmatpush1.msra.mxu0 0.0
        %1049 = vmatprep.subr.mxu0 0.0
        %1050 = vmatpush1.msra.mxu0 0.0
        %1051 = vmatprep.subr.mxu0 0.0
        %1052 = vmatpush1.msra.mxu0 0.0
        %1053 = vmatprep.subr.mxu0 0.0
        %1054 = vmatpush1.msra.mxu0 0.0
        %1055 = vmatprep.subr.mxu0 0.0
        %1056 = vmatpush1.msra.mxu0 0.0
        %1057 = vmatprep.subr.mxu0 0.0
        %1058 = vmatpush1.msra.mxu0 0.0
        %1059 = vmatprep.subr.mxu0 0.0
        %1060 = vmatpush1.msra.mxu0 0.0
        %1061 = vmatprep.subr.mxu0 0.0
        %1062 = vmatpush1.msra.mxu0 0.0
        %1063 = vmatprep.subr.mxu0 0.0
        %1064 = vmatpush1.msra.mxu0 0.0
        %1065 = vmatprep.subr.mxu0 0.0
        %1066 = vmatpush1.msra.mxu0 0.0
        %1067 = vmatprep.subr.mxu0 0.0
        %1068 = vmatpush1.msra.mxu0 0.0
        %1069 = vmatprep.subr.mxu0 0.0
        %1070 = vmatpush1.msra.mxu0 0.0
        %1071 = vmatprep.subr.mxu0 0.0
        %1072 = vmatpush1.msra.mxu0 0.0
        %1073 = vmatprep.subr.mxu0 0.0
        %1074 = vmatpush1.msra.mxu0 0.0
        %1075 = vmatprep.subr.mxu0 0.0
        %1076 = vmatpush1.msra.mxu0 0.0
        %1077 = vmatprep.subr.mxu0 0.0
        %1078 = vmatpush1.msra.mxu0 0.0
        %1079 = vmatprep.subr.mxu0 0.0
        %1080 = vmatpush1.msra.mxu0 0.0
        %1081 = vmatprep.subr.mxu0 0.0
        %1082 = vmatpush1.msra.mxu0 0.0
        %1083 = vmatprep.subr.mxu0 0.0
        %1084 = vmatpush1.msra.mxu0 0.0
        %1085 = vmatprep.subr.mxu0 0.0
        %1086 = vmatpush1.msra.mxu0 0.0
        %1087 = vmatprep.subr.mxu0 0.0
        %1088 = vmatpush1.msra.mxu0 0.0
        %1089 = vmatprep.subr.mxu0 0.0
        %1090 = vmatpush1.msra.mxu0 0.0
        %1091 = vmatprep.subr.mxu0 0.0
        %1092 = vmatpush1.msra.mxu0 0.0
        %1093 = vmatprep.subr.mxu0 0.0
        %1094 = vmatpush1.msra.mxu0 0.0
        %1095 = vmatprep.subr.mxu0 0.0
        %1096 = vmatpush1.msra.mxu0 0.0
        %1097 = vmatprep.subr.mxu0 0.0
        %1098 = vmatpush1.msra.mxu0 0.0
        %1099 = vmatprep.mubr.f32.mxu0 0.0
        %1100 = vmatmul.mubr.f32.gmra.mrb[0].mxu0 %v1033
        %v1101 = vpop.f32.mrb[0].mxu0
        %v1102 = vadd.f32 0.0, %v1101
        %v1103 = vpop.f32.mrb[0].mxu0
        %1104 = vdwg.mxu0
        %v1105 = vadd.f32 %v863, %v1102
        %1106 = vrot.lane.b32.xlu0 %v385, 104
        %v1107 = vpop.permute.xlu0 %1106
        %1108 = vrot.lane.b32.xlu0 %v385, 72
        %v1109 = vpop.permute.xlu0 %1108
        %v1110 = vsel %vm391, %v1107, 0
        %v1112 = vsel %vm391, %v1109, 0
        %1114 = vmatprep.subr.mxu0 0.0
        %1115 = vmatpush1.xpose.msra.mxu0 %v1112
        %1116 = vmatprep.subr.mxu0 0.0
        %1117 = vmatpush1.xpose.msra.mxu0 0.0
        %1118 = vmatprep.subr.mxu0 0.0
        %1119 = vmatpush1.xpose.msra.mxu0 0.0
        %1120 = vmatprep.subr.mxu0 0.0
        %1121 = vmatpush1.xpose.msra.mxu0 0.0
        %1122 = vmatprep.subr.mxu0 0.0
        %1123 = vmatpush1.xpose.msra.mxu0 0.0
        %1124 = vmatprep.subr.mxu0 0.0
        %1125 = vmatpush1.xpose.msra.mxu0 0.0
        %1126 = vmatprep.subr.mxu0 0.0
        %1127 = vmatpush1.xpose.msra.mxu0 0.0
        %1128 = vmatprep.subr.mxu0 0.0
        %1129 = vmatpush1.xpose.msra.mxu0 0.0
        %1130 = vmatprep.subr.mxu0 0.0
        %1131 = vmatpush1.xpose.msra.mxu0 0.0
        %1132 = vmatprep.subr.mxu0 0.0
        %1133 = vmatpush1.xpose.msra.mxu0 0.0
        %1134 = vmatprep.subr.mxu0 0.0
        %1135 = vmatpush1.xpose.msra.mxu0 0.0
        %1136 = vmatprep.subr.mxu0 0.0
        %1137 = vmatpush1.xpose.msra.mxu0 0.0
        %1138 = vmatprep.subr.mxu0 0.0
        %1139 = vmatpush1.xpose.msra.mxu0 0.0
        %1140 = vmatprep.subr.mxu0 0.0
        %1141 = vmatpush1.xpose.msra.mxu0 0.0
        %1142 = vmatprep.subr.mxu0 0.0
        %1143 = vmatpush1.xpose.msra.mxu0 0.0
        %1144 = vmatprep.subr.mxu0 0.0
        %1145 = vmatpush1.xpose.msra.mxu0 0.0
        %1146 = vmatprep.subr.mxu0 0.0
        %1147 = vmatpush1.xpose.msra.mxu0 0.0
        %1148 = vmatprep.subr.mxu0 0.0
        %1149 = vmatpush1.xpose.msra.mxu0 0.0
        %1150 = vmatprep.subr.mxu0 0.0
        %1151 = vmatpush1.xpose.msra.mxu0 0.0
        %1152 = vmatprep.subr.mxu0 0.0
        %1153 = vmatpush1.xpose.msra.mxu0 0.0
        %1154 = vmatprep.subr.mxu0 0.0
        %1155 = vmatpush1.xpose.msra.mxu0 0.0
        %1156 = vmatprep.subr.mxu0 0.0
        %1157 = vmatpush1.xpose.msra.mxu0 0.0
        %1158 = vmatprep.subr.mxu0 0.0
        %1159 = vmatpush1.xpose.msra.mxu0 0.0
        %1160 = vmatprep.subr.mxu0 0.0
        %1161 = vmatpush1.xpose.msra.mxu0 0.0
        %1162 = vmatprep.subr.mxu0 0.0
        %1163 = vmatpush1.xpose.msra.mxu0 0.0
        %1164 = vmatprep.subr.mxu0 0.0
        %1165 = vmatpush1.xpose.msra.mxu0 0.0
        %1166 = vmatprep.subr.mxu0 0.0
        %1167 = vmatpush1.xpose.msra.mxu0 0.0
        %1168 = vmatprep.subr.mxu0 0.0
        %1169 = vmatpush1.xpose.msra.mxu0 0.0
        %1170 = vmatprep.subr.mxu0 0.0
        %1171 = vmatpush1.xpose.msra.mxu0 0.0
        %1172 = vmatprep.subr.mxu0 0.0
        %1173 = vmatpush1.xpose.msra.mxu0 0.0
        %1174 = vmatprep.subr.mxu0 0.0
        %1175 = vmatpush1.xpose.msra.mxu0 0.0
        %1176 = vmatprep.subr.mxu0 0.0
        %1177 = vmatpush1.xpose.msra.mxu0 0.0
        %1178 = vmatprep.mubr.f32.mxu0 0.0
        %1179 = vmatmul.mubr.f32.gmra.mrb[0].mxu0 %v1110
        %v1180 = vpop.f32.mrb[0].mxu0
        %v1181 = vadd.f32 0.0, %v1180
        %v1182 = vpop.f32.mrb[0].mxu0
        %1183 = vdwg.mxu0
        %v1184 = vsel %vm391, %v1181, -inf
        %1185 = vmax.xlane.f32.xlu0 %v1184
        %v1186 = vpop.xlane.xlu0 %1185
        %v1187 = vsub.f32 %v1181, %v1186
        %v1188 = vmul.f32 %v1187, 1.442695
        %v1189 = vpow.pop %v1188
        %v1190 = vsel %vm391, %v1189, 0.0
        %1191 = vadd.xlane.f32.xlu0 %v1190
        %v1192 = vpop.xlane.xlu0 %1191
        %v1193 = vrcp.pop %v1192
        %1194 = vrot.lane.b32.xlu0 %v385, 40
        %v1195 = vpop.permute.xlu0 %1194
        %v1198 = vsel %vm391, %v1189, 0
        %1200 = vmatprep.subr.mxu0 0.0
        %1201 = vmatpush1.msra.mxu0 %v1195
        %1202 = vmatprep.subr.mxu0 0.0
        %1203 = vmatpush1.msra.mxu0 0.0
        %1204 = vmatprep.subr.mxu0 0.0
        %1205 = vmatpush1.msra.mxu0 0.0
        %1206 = vmatprep.subr.mxu0 0.0
        %1207 = vmatpush1.msra.mxu0 0.0
        %1208 = vmatprep.subr.mxu0 0.0
        %1209 = vmatpush1.msra.mxu0 0.0
        %1210 = vmatprep.subr.mxu0 0.0
        %1211 = vmatpush1.msra.mxu0 0.0
        %1212 = vmatprep.subr.mxu0 0.0
        %1213 = vmatpush1.msra.mxu0 0.0
        %1214 = vmatprep.subr.mxu0 0.0
        %1215 = vmatpush1.msra.mxu0 0.0
        %1216 = vmatprep.subr.mxu0 0.0
        %1217 = vmatpush1.msra.mxu0 0.0
        %1218 = vmatprep.subr.mxu0 0.0
        %1219 = vmatpush1.msra.mxu0 0.0
        %1220 = vmatprep.subr.mxu0 0.0
        %1221 = vmatpush1.msra.mxu0 0.0
        %1222 = vmatprep.subr.mxu0 0.0
        %1223 = vmatpush1.msra.mxu0 0.0
        %1224 = vmatprep.subr.mxu0 0.0
        %1225 = vmatpush1.msra.mxu0 0.0
        %1226 = vmatprep.subr.mxu0 0.0
        %1227 = vmatpush1.msra.mxu0 0.0
        %1228 = vmatprep.subr.mxu0 0.0
        %1229 = vmatpush1.msra.mxu0 0.0
        %1230 = vmatprep.subr.mxu0 0.0
        %1231 = vmatpush1.msra.mxu0 0.0
        %1232 = vmatprep.subr.mxu0 0.0
        %1233 = vmatpush1.msra.mxu0 0.0
        %1234 = vmatprep.subr.mxu0 0.0
        %1235 = vmatpush1.msra.mxu0 0.0
        %1236 = vmatprep.subr.mxu0 0.0
        %1237 = vmatpush1.msra.mxu0 0.0
        %1238 = vmatprep.subr.mxu0 0.0
        %1239 = vmatpush1.msra.mxu0 0.0
        %1240 = vmatprep.subr.mxu0 0.0
        %1241 = vmatpush1.msra.mxu0 0.0
        %1242 = vmatprep.subr.mxu0 0.0
        %1243 = vmatpush1.msra.mxu0 0.0
        %1244 = vmatprep.subr.mxu0 0.0
        %1245 = vmatpush1.msra.mxu0 0.0
        %1246 = vmatprep.subr.mxu0 0.0
        %1247 = vmatpush1.msra.mxu0 0.0
        %1248 = vmatprep.subr.mxu0 0.0
        %1249 = vmatpush1.msra.mxu0 0.0
        %1250 = vmatprep.subr.mxu0 0.0
        %1251 = vmatpush1.msra.mxu0 0.0
        %1252 = vmatprep.subr.mxu0 0.0
        %1253 = vmatpush1.msra.mxu0 0.0
        %1254 = vmatprep.subr.mxu0 0.0
        %1255 = vmatpush1.msra.mxu0 0.0
        %1256 = vmatprep.subr.mxu0 0.0
        %1257 = vmatpush1.msra.mxu0 0.0
        %1258 = vmatprep.subr.mxu0 0.0
        %1259 = vmatpush1.msra.mxu0 0.0
        %1260 = vmatprep.subr.mxu0 0.0
        %1261 = vmatpush1.msra.mxu0 0.0
        %1262 = vmatprep.subr.mxu0 0.0
        %1263 = vmatpush1.msra.mxu0 0.0
        %1264 = vmatprep.mubr.f32.mxu0 0.0
        %1265 = vmatmul.mubr.f32.gmra.mrb[0].mxu0 %v1198
        %v1266 = vpop.f32.mrb[0].mxu0
        %v1267 = vadd.f32 0.0, %v1266
        %v1268 = vpop.f32.mrb[0].mxu0
        %1269 = vdwg.mxu0
        %v1270 = vmul.f32 %v1267, %v1193
        %v1271 = vld [vmem:[#allocation7 + $0x18] sm:$0xff]
        %v1273 = vsel %vm391, %v1270, 0
        %1275 = vmatprep.subr.mxu0 0.0
        %1276 = vmatpush1.msra.mxu0 %v1271
        %1277 = vmatprep.subr.mxu0 0.0
        %1278 = vmatpush1.msra.mxu0 0.0
        %1279 = vmatprep.subr.mxu0 0.0
        %1280 = vmatpush1.msra.mxu0 0.0
        %1281 = vmatprep.subr.mxu0 0.0
        %1282 = vmatpush1.msra.mxu0 0.0
        %1283 = vmatprep.subr.mxu0 0.0
        %1284 = vmatpush1.msra.mxu0 0.0
        %1285 = vmatprep.subr.mxu0 0.0
        %1286 = vmatpush1.msra.mxu0 0.0
        %1287 = vmatprep.subr.mxu0 0.0
        %1288 = vmatpush1.msra.mxu0 0.0
        %1289 = vmatprep.subr.mxu0 0.0
        %1290 = vmatpush1.msra.mxu0 0.0
        %1291 = vmatprep.subr.mxu0 0.0
        %1292 = vmatpush1.msra.mxu0 0.0
        %1293 = vmatprep.subr.mxu0 0.0
        %1294 = vmatpush1.msra.mxu0 0.0
        %1295 = vmatprep.subr.mxu0 0.0
        %1296 = vmatpush1.msra.mxu0 0.0
        %1297 = vmatprep.subr.mxu0 0.0
        %1298 = vmatpush1.msra.mxu0 0.0
        %1299 = vmatprep.subr.mxu0 0.0
        %1300 = vmatpush1.msra.mxu0 0.0
        %1301 = vmatprep.subr.mxu0 0.0
        %1302 = vmatpush1.msra.mxu0 0.0
        %1303 = vmatprep.subr.mxu0 0.0
        %1304 = vmatpush1.msra.mxu0 0.0
        %1305 = vmatprep.subr.mxu0 0.0
        %1306 = vmatpush1.msra.mxu0 0.0
        %1307 = vmatprep.subr.mxu0 0.0
        %1308 = vmatpush1.msra.mxu0 0.0
        %1309 = vmatprep.subr.mxu0 0.0
        %1310 = vmatpush1.msra.mxu0 0.0
        %1311 = vmatprep.subr.mxu0 0.0
        %1312 = vmatpush1.msra.mxu0 0.0
        %1313 = vmatprep.subr.mxu0 0.0
        %1314 = vmatpush1.msra.mxu0 0.0
        %1315 = vmatprep.subr.mxu0 0.0
        %1316 = vmatpush1.msra.mxu0 0.0
        %1317 = vmatprep.subr.mxu0 0.0
        %1318 = vmatpush1.msra.mxu0 0.0
        %1319 = vmatprep.subr.mxu0 0.0
        %1320 = vmatpush1.msra.mxu0 0.0
        %1321 = vmatprep.subr.mxu0 0.0
        %1322 = vmatpush1.msra.mxu0 0.0
        %1323 = vmatprep.subr.mxu0 0.0
        %1324 = vmatpush1.msra.mxu0 0.0
        %1325 = vmatprep.subr.mxu0 0.0
        %1326 = vmatpush1.msra.mxu0 0.0
        %1327 = vmatprep.subr.mxu0 0.0
        %1328 = vmatpush1.msra.mxu0 0.0
        %1329 = vmatprep.subr.mxu0 0.0
        %1330 = vmatpush1.msra.mxu0 0.0
        %1331 = vmatprep.subr.mxu0 0.0
        %1332 = vmatpush1.msra.mxu0 0.0
        %1333 = vmatprep.subr.mxu0 0.0
        %1334 = vmatpush1.msra.mxu0 0.0
        %1335 = vmatprep.subr.mxu0 0.0
        %1336 = vmatpush1.msra.mxu0 0.0
        %1337 = vmatprep.subr.mxu0 0.0
        %1338 = vmatpush1.msra.mxu0 0.0
        %1339 = vmatprep.mubr.f32.mxu0 0.0
        %1340 = vmatmul.mubr.f32.gmra.mrb[0].mxu0 %v1273
        %v1341 = vpop.f32.mrb[0].mxu0
        %v1342 = vadd.f32 0.0, %v1341
        %v1343 = vpop.f32.mrb[0].mxu0
        %1344 = vdwg.mxu0
        %v1345 = vadd.f32 %v1105, %v1342
        %v1346 = vadd.f32 %v284, %v1345
        %v1347 = vlaneseq
        %v1348 = vshrl.u32 %v1347, 7
        %v1349 = vsub.s32 4, %v1348
        %v1350 = vrot.slane %v285, %v1349
        %v1351 = vadd.f32 %v1346, %v1350
        %v1352 = vsel %vm286, %v1351, 0.0
        %1353 = vadd.xlane.f32.xlu0 %v1352
        %v1354 = vpop.xlane.xlu0 %1353
        %v1355 = vmul.f32 %v1354, %v290
        %v1356 = vsub.f32 %v1351, %v1355
        %v1357 = vmul.f32 %v1356, %v1356
        %v1358 = vsel %vm286, %v1357, 0.0
        %1359 = vadd.xlane.f32.xlu0 %v1358
        %v1360 = vpop.xlane.xlu0 %1359
        %v1361 = vmul.f32 %v1360, %v290
        %v1362 = vadd.f32 %v1361, 1e-05
        %v1363 = vrsqrt.pop %v1362
        %v1364 = vmul.f32 %v1356, %v1363
        %v1365 = vlaneseq
        %v1366 = vshrl.u32 %v1365, 7
        %v1367 = vsub.s32 2, %v1366
        %v1368 = vrot.slane %v285, %v1367
        %v1369 = vmul.f32 %v1364, %v1368
        %v1370 = vlaneseq
        %v1371 = vshrl.u32 %v1370, 7
        %v1372 = vsub.s32 3, %v1371
        %v1373 = vrot.slane %v285, %v1372
        %v1374 = vadd.f32 %v1369, %v1373
        %v1375 = vld [vmem:[#allocation8] sm:$0xff]
        %v1376 = vld [vmem:[#allocation8 + $0x8] sm:$0xff]
        %v1377 = vld [vmem:[#allocation8 + $0x10] sm:$0xff]
        %v1378 = vld [vmem:[#allocation8 + $0x18] sm:$0xff]
        %v1379 = vlaneseq
        %v1380 = vshrl.u32 %v1379, 7
        %v1381 = vsub.s32 5, %v1380
        %v1382 = vrot.slane %v285, %v1381
        %v1384 = vsel %vm286, %v1374, 0
        %1386 = vmatprep.subr.mxu0 0.0
        %1387 = vmatpush1.msra.mxu0 %v1375
        %1388 = vmatprep.subr.mxu0 0.0
        %1389 = vmatpush1.msra.mxu0 %v1376
        %1390 = vmatprep.subr.mxu0 0.0
        %1391 = vmatpush1.msra.mxu0 %v1377
        %1392 = vmatprep.subr.mxu0 0.0
        %1393 = vmatpush1.msra.mxu0 %v1378
        %1394 = vmatprep.subr.mxu0 0.0
        %1395 = vmatpush1.msra.mxu0 0.0
        %1396 = vmatprep.subr.mxu0 0.0
        %1397 = vmatpush1.msra.mxu0 0.0
        %1398 = vmatprep.subr.mxu0 0.0
        %1399 = vmatpush1.msra.mxu0 0.0
        %1400 = vmatprep.subr.mxu0 0.0
        %1401 = vmatpush1.msra.mxu0 0.0
        %1402 = vmatprep.subr.mxu0 0.0
        %1403 = vmatpush1.msra.mxu0 0.0
        %1404 = vmatprep.subr.mxu0 0.0
        %1405 = vmatpush1.msra.mxu0 0.0
        %1406 = vmatprep.subr.mxu0 0.0
        %1407 = vmatpush1.msra.mxu0 0.0
        %1408 = vmatprep.subr.mxu0 0.0
        %1409 = vmatpush1.msra.mxu0 0.0
        %1410 = vmatprep.subr.mxu0 0.0
        %1411 = vmatpush1.msra.mxu0 0.0
        %1412 = vmatprep.subr.mxu0 0.0
        %1413 = vmatpush1.msra.mxu0 0.0
        %1414 = vmatprep.subr.mxu0 0.0
        %1415 = vmatpush1.msra.mxu0 0.0
        %1416 = vmatprep.subr.mxu0 0.0
        %1417 = vmatpush1.msra.mxu0 0.0
        %1418 = vmatprep.subr.mxu0 0.0
        %1419 = vmatpush1.msra.mxu0 0.0
        %1420 = vmatprep.subr.mxu0 0.0
        %1421 = vmatpush1.msra.mxu0 0.0
        %1422 = vmatprep.subr.mxu0 0.0
        %1423 = vmatpush1.msra.mxu0 0.0
        %1424 = vmatprep.subr.mxu0 0.0
        %1425 = vmatpush1.msra.mxu0 0.0
        %1426 = vmatprep.subr.mxu0 0.0
        %1427 = vmatpush1.msra.mxu0 0.0
        %1428 = vmatprep.subr.mxu0 0.0
        %1429 = vmatpush1.msra.mxu0 0.0
        %1430 = vmatprep.subr.mxu0 0.0
        %1431 = vmatpush1.msra.mxu0 0.0
        %1432 = vmatprep.subr.mxu0 0.0
        %1433 = vmatpush1.msra.mxu0 0.0
        %1434 = vmatprep.subr.mxu0 0.0
        %1435 = vmatpush1.msra.mxu0 0.0
        %1436 = vmatprep.subr.mxu0 0.0
        %1437 = vmatpush1.msra.mxu0 0.0
        %1438 = vmatprep.subr.mxu0 0.0
        %1439 = vmatpush1.msra.mxu0 0.0
        %1440 = vmatprep.subr.mxu0 0.0
        %1441 = vmatpush1.msra.mxu0 0.0
        %1442 = vmatprep.subr.mxu0 0.0
        %1443 = vmatpush1.msra.mxu0 0.0
        %1444 = vmatprep.subr.mxu0 0.0
        %1445 = vmatpush1.msra.mxu0 0.0
        %1446 = vmatprep.subr.mxu0 0.0
        %1447 = vmatpush1.msra.mxu0 0.0
        %1448 = vmatprep.subr.mxu0 0.0
        %1449 = vmatpush1.msra.mxu0 0.0
        %1450 = vmatprep.mubr.f32.mxu0 0.0
        %1451 = vmatmul.mubr.f32.gmra.mrb[0].mxu0 %v1384
        %v1452 = vpop.f32.mrb[0].mxu0
        %v1453 = vadd.f32 %v1382, %v1452
        %v1454 = vpop.f32.mrb[0].mxu0
        %1455 = vdwg.mxu0
        %v1456 = vmax.f32 %v1453, 0.0
        %v1457 = vadd.f32 %v1351, %v1456
        %1458 = vst.msk [vmem:[%s283] sm:$0xff] %vm286, %v1457
        %s1459 = sand.u32 %s142, 1
        %s1460 = scalar_lea.sflag [#allocation4], %s1459
        %s1461 = sand.u32 %s142, 1
        %s1462 = smul.addr %s1461, 8
        %s1463 = scalar_lea.vmem [#allocation10], %s1462
        // Predicated region
        $region57: #{tpu_custom_call.1} parent=39 // pred_check
          %p1464 = pneg %p152
        $region58: #{tpu_custom_call.1} parent=39 // pred_check_branch
          %1466 = sbr.rel (%p1464) target = $region60
        $region59: #{tpu_custom_call.1} parent=39 // pred_region
          %s1468 = ssub.s32 128, 128
          %1469 = vsyncadd %s1460, %s1468
          %s1470 = smul.addr %s24, 128
          %s1471 = scalar_lea.hbm %s5, %s1470
          %s1473 = sshll.u32 %s1463, 4
          %s1474 = int_to_ptr.vmem [resolvable:$true] %s1473
          %1476 = dma.vmem_to_hbm [thread:$0]  %s1474, 128, %s1471, %s1460
        $region60: #{tpu_custom_call.1} parent=39 // pred_fallthru
          _
      $region40: #{tpu_custom_call.1} parent=5 // pred_fallthru
        _
      %p1477 = scmp.le.s32.totalorder 2, %s19
      // Predicated region
      $region61: #{tpu_custom_call.1} parent=5 // pred_check
        %p1478 = pneg %p1477
      $region62: #{tpu_custom_call.1} parent=5 // pred_check_branch
        %1480 = sbr.rel (%p1478) target = $region64
      $region63: #{tpu_custom_call.1} parent=5 // pred_region
        %s1481 = ssub.s32 %s19, 2
        // Predicated region
        $region65: #{tpu_custom_call.1} parent=63 // pred_check
          %p1482 = pneg %p158
        $region66: #{tpu_custom_call.1} parent=63 // pred_check_branch
          %1484 = sbr.rel (%p1482) target = $region68
        $region67: #{tpu_custom_call.1} parent=63 // pred_region
          %s1485 = sand.u32 %s143, 1
          %s1486 = scalar_lea.sflag [#allocation4], %s1485
          %s1487 = sand.u32 %s143, 1
          %s1488 = smul.addr %s1487, 8
          %s1489 = scalar_lea.vmem [#allocation10], %s1488
          %1490 = dma.done %s1486, 128
        $region68: #{tpu_custom_call.1} parent=63 // pred_fallthru
          _
      $region64: #{tpu_custom_call.1} parent=5 // pred_fallthru
        _
    $region6: #{tpu_custom_call.1} parent=1 // loop_footer
      %s23 = sadd.s32 1, %s19
    $region7: #{tpu_custom_call.1} parent=1 // loop_footer_branch
      %18 = sbr.rel target = $region3
    $region8: #{tpu_custom_call.1} parent=1 // loop_exit
      _
    %1491 = vsyncpa [#allocation3], 1
    %s1492 = scalar_lea.sflag [#allocation3], 1
    %1493 = vsyncpa %s1492, 1
    %1494 = vsyncpa [#allocation6], 1
    %1495 = vsyncpa [#allocation9], 1
    %1496 = vsyncpa [#allocation4], 1
    %s1497 = scalar_lea.sflag [#allocation4], 1
    %1498 = vsyncpa %s1497, 1

</llo_original>
